<compile_context>
chip_gen: v5e
topology: v5e:2x2
jax: 0.10.0
libtpu: 0.0.40
codegen_flags: <defaults>
</compile_context>

<pallas_src>
import jax
import jax.numpy as jnp
from jax.experimental import pallas as pl
from jax.experimental.pallas import tpu as pltpu


def _make_kernel(num_heads, head_dim, matmul_dtype, use_head_mask, gelu_approximate):
    eps = 1e-5

    def norm(v):
        # gamma/beta are folded into the downstream linears -> pure normalization.
        mu = jnp.mean(v, axis=-1, keepdims=True)
        var = jnp.mean((v - mu) ** 2, axis=-1, keepdims=True)
        return (v - mu) * jax.lax.rsqrt(var + eps)

    def mm(a, b):
        return jnp.dot(a.astype(matmul_dtype), b.astype(matmul_dtype),
                       preferred_element_type=jnp.float32)

    def mm_nt(a, b):  # a @ b.T without materialising the transpose
        return jax.lax.dot_general(
            a.astype(matmul_dtype), b.astype(matmul_dtype),
            (((1,), (1,)), ((), ())), preferred_element_type=jnp.float32)

    def ein(expr, a, b):
        return jnp.einsum(expr, a.astype(matmul_dtype), b.astype(matmul_dtype),
                          preferred_element_type=jnp.float32)

    def gelu(v):
        if gelu_approximate:
            # tanh approximation: tanh runs on the EUP (its own VLIW slot).
            c = 0.7978845608028654  # sqrt(2/pi)
            return 0.5 * v * (1.0 + jnp.tanh(c * (v + 0.044715 * v * v * v)))
        # exact (erf-based) GELU, matching torch.nn.GELU()
        return 0.5 * v * (1.0 + jax.lax.erf(v * (2.0 ** -0.5)))

    def kernel(z_ref, x_ref,
               wq, bq, wk, bk, wv, bv, wproj, bproj,
               w1, b1, w2, b2, hmask_ref,
               o_ref,
               q_scr, k_scr, v_scr, z1_scr, zn2_scr, ff_scr):
        h_idx = pl.program_id(1)
        n_h = pl.num_programs(1)
        bblk, n_q, c_z = z_ref.shape
        _, n_kv, c_x = x_ref.shape
        rows = bblk * n_q

        # ---- cross attention + first residual: runs once per batch block ----
        @pl.when(h_idx == 0)
        def _attention_phase():
            z2 = z_ref[...].reshape(rows, c_z).astype(jnp.float32)
            x2 = x_ref[...].reshape(bblk * n_kv, c_x).astype(jnp.float32)

            zn = norm(z2)      # norm_z1 (gamma/beta folded into wq/bq)
            xn = norm(x2)      # norm_x  (gamma/beta folded into wk/bk, wv/bv)

            # attention scale already folded into wq / bq at parameter prep
            q_scr[...] = mm(zn, wq[...]) + bq[0]
            k_scr[...] = mm(xn, wk[...]) + bk[0]
            v_scr[...] = mm(xn, wv[...]) + bv[0]

            hm = hmask_ref[...]      # (H, 1, C_z) head-lane mask (hoisted out of loop)

            def item(b, carry):
                q_start = pl.multiple_of(b * n_q, n_q)
                kv_start = pl.multiple_of(b * n_kv, n_kv)
                qb = q_scr[pl.ds(q_start, n_q), :]        # (n_q,  C)
                kb = k_scr[pl.ds(kv_start, n_kv), :]      # (n_kv, C)
                vb = v_scr[pl.ds(kv_start, n_kv), :]      # (n_kv, C)

                if use_head_mask:
                    # Heads stacked on the sublane axis via the lane mask: one dense
                    # (H*n_q, C)x(C, n_kv) score matmul, one dense value matmul, then
                    # mask-multiply + head sum reassembles the head concat (no lane
                    # slicing / lane concat). Only used while H*head_dim == C_z is
                    # within the MXU contraction tile.
                    qm = (hm * qb[None, :, :]).reshape(num_heads * n_q, c_z)
                    s = mm_nt(qm, kb)                              # (H*n_q, n_kv)
                    m = jnp.max(s, axis=-1, keepdims=True)
                    p = jnp.exp(s - m)
                    p = p * pl.reciprocal(jnp.sum(p, axis=-1, keepdims=True),
                                          approx=True)
                    o = mm(p, vb)                                  # (H*n_q, C)
                    o = (o.reshape(num_heads, n_q, c_z) * hm).sum(axis=0)
                else:
                    # Production head counts: heads-as-batch dot_general (avoids the
                    # H x FLOP blow-up of the mask trick at large C_z).
                    qh = qb.reshape(n_q, num_heads, head_dim).transpose(1, 0, 2)
                    kh = kb.reshape(n_kv, num_heads, head_dim).transpose(1, 0, 2)
                    vh = vb.reshape(n_kv, num_heads, head_dim).transpose(1, 0, 2)
                    s = ein("hqd,hkd->hqk", qh, kh)                # (H, n_q, n_kv)
                    m = jnp.max(s, axis=-1, keepdims=True)
                    p = jnp.exp(s - m)
                    p = p * pl.reciprocal(jnp.sum(p, axis=-1, keepdims=True),
                                          approx=True)
                    o = ein("hqk,hkd->hqd", p, vh)                 # (H, n_q, hd)
                    o = o.transpose(1, 0, 2).reshape(n_q, c_z)

                # stage per-item head-concat output (ff_scr doubles as attn staging)
                ff_scr[pl.ds(q_start, n_q), :] = o
                return carry

            jax.lax.fori_loop(0, bblk, item, 0)

            attn = mm(ff_scr[...], wproj[...]) + bproj[0]
            z1 = z2 + attn                        # first residual
            z1_scr[...] = z1
            zn2_scr[...] = norm(z1)               # norm_z2 (gamma/beta folded into w1/b1)
            ff_scr[...] = jnp.zeros((rows, c_z), jnp.float32)

        # ---- feed-forward: one lane-dense hidden chunk per grid step on axis 1 ----
        hpre = mm(zn2_scr[...], w1[...]) + b1[0]
        ff_scr[...] += mm(gelu(hpre), w2[...])

        @pl.when(h_idx == n_h - 1)
        def _finalize():
            out = z1_scr[...] + ff_scr[...] + b2[0]   # second residual
            o_ref[...] = out.reshape(bblk, n_q, c_z).astype(o_ref.dtype)

    return kernel


def _tpu_budget():
    """Per-generation scoped-VMEM cap and MXU row-fill target (best effort)."""
    cap = 64 * 1024 * 1024
    try:
        info = pltpu.get_tpu_info()
        cap = int(getattr(info, "vmem_capacity_bytes", cap))
    except Exception:
        pass
    if cap >= 96 * 1024 * 1024:         # v5e / v6e: 128 MiB physical VMEM
        return 96 * 1024 * 1024, 512
    return 48 * 1024 * 1024, 256        # v7x: 64 MiB physical VMEM


def _choose_block_b(batch, n_q, target_rows):
    """Largest batch chunk whose row count fits the MXU target, hard-enforcing
    >=2 grid steps (both v7x TensorCores / pipeline overlap) whenever batch>=2."""
    divisors = [d for d in range(1, batch + 1) if batch % d == 0]
    fitting = [d for d in divisors if d * n_q <= target_rows] or [1]
    bblk = max(fitting)
    if batch >= 2:
        two_step = [d for d in divisors if batch // d >= 2]
        bblk = min(bblk, max(two_step))
    return bblk


def _choose_hidden_chunk(hidden, max_chunk):
    """Largest divisor of `hidden` <= max_chunk, preferring lane-dense (128x) chunks,
    so the MLP grid axis never silently materialises the full intermediate."""
    max_chunk = max(1, min(hidden, max_chunk))
    for c in range(max_chunk, 0, -1):
        if hidden % c == 0 and c % 128 == 0:
            return c
    for c in range(max_chunk, 0, -1):
        if hidden % c == 0:
            return c
    return hidden


def fuse_block_forward(z, x, params, *, num_heads, block_b=None,
                       mlp_hidden_chunk=512, matmul_dtype=jnp.bfloat16,
                       gelu_approximate=False, head_mask_max_dim=256):
    B, N_q, C_z = z.shape
    _, N_kv, C_x = x.shape
    assert C_z % num_heads == 0
    head_dim = C_z // num_heads
    scale = head_dim ** -0.5
    hidden = params["w1"].shape[1]

    # ---- one-time parameter prep (wrapper side, free) ----
    # Fold LayerNorm gamma/beta into the downstream linears and the attention scale
    # into wq/bq: the in-kernel LayerNorms become pure normalization (VPU relief).
    g1, be1 = params["nz1_w"][0], params["nz1_b"][0]
    gx, bex = params["nx_w"][0], params["nx_b"][0]
    g2, be2 = params["nz2_w"][0], params["nz2_b"][0]

    wq = params["wq"] * g1[:, None] * scale
    bq = (be1[None, :] @ params["wq"]) * scale
    wk = params["wk"] * gx[:, None]
    bk = bex[None, :] @ params["wk"]
    wv = params["wv"] * gx[:, None]
    bv = bex[None, :] @ params["wv"]
    w1 = params["w1"] * g2[:, None]
    b1 = params["b1"] + be2[None, :] @ params["w1"]
    wproj, bproj = params["wproj"], params["bproj"]
    w2, b2 = params["w2"], params["b2"]

    # (H, 1, C_z) lane mask selecting each head's contiguous feature slice.
    lane = jnp.arange(C_z)
    head_mask = (lane[None, :] // head_dim == jnp.arange(num_heads)[:, None])
    head_mask = head_mask.astype(jnp.float32)[:, None, :]
    use_head_mask = C_z <= head_mask_max_dim

    def wcast(w):   # bf16 weights: MXU-native on all generations, halves VMEM/HBM bytes
        return w.astype(matmul_dtype)

    vmem_limit, target_rows = _tpu_budget()
    if block_b is None:
        block_b = _choose_block_b(B, N_q, target_rows)
    assert B % block_b == 0, "batch must be divisible by block_b"
    grid_b = B // block_b

    hchunk = _choose_hidden_chunk(hidden, mlp_hidden_chunk)
    n_h = hidden // hchunk

    weight_args = (
        wcast(wq), bq, wcast(wk), bk, wcast(wv), bv,
        wcast(wproj), bproj,
        wcast(w1), b1, wcast(w2), b2,
        head_mask,
    )

    def const_spec(shape):
        nd = len(shape)
        # Block index never changes -> single-buffer: halves weight VMEM vs the
        # default double buffering; no redundant per-step weight DMAs.
        return pl.BlockSpec(shape, lambda g, h: (0,) * nd,
                            pipeline_mode=pl.Buffered(1))

    weight_specs = [
        const_spec(weight_args[0].shape),                  # wq
        const_spec(weight_args[1].shape),                  # bq
        const_spec(weight_args[2].shape),                  # wk
        const_spec(weight_args[3].shape),                  # bk
        const_spec(weight_args[4].shape),                  # wv
        const_spec(weight_args[5].shape),                  # bv
        const_spec(weight_args[6].shape),                  # wproj
        const_spec(weight_args[7].shape),                  # bproj
        # w1 / b1 / w2 stream one hidden chunk per grid step (default double
        # buffering: next chunk's weights prefetch while the MXU runs this one).
        pl.BlockSpec((C_z, hchunk), lambda g, h: (0, h)),  # w1
        pl.BlockSpec((1, hchunk), lambda g, h: (0, h)),    # b1
        pl.BlockSpec((hchunk, C_z), lambda g, h: (h, 0)),  # w2
        const_spec(weight_args[11].shape),                 # b2
        const_spec(weight_args[12].shape),                 # head_mask
    ]

    kernel = _make_kernel(num_heads, head_dim, matmul_dtype,
                          use_head_mask, gelu_approximate)

    return pl.pallas_call(
        kernel,
        out_shape=jax.ShapeDtypeStruct((B, N_q, C_z), z.dtype),
        grid_spec=pltpu.PrefetchScalarGridSpec(
            num_scalar_prefetch=0,
            grid=(grid_b, n_h),
            in_specs=[
                pl.BlockSpec((block_b, N_q, C_z), lambda g, h: (g, 0, 0)),
                pl.BlockSpec((block_b, N_kv, C_x), lambda g, h: (g, 0, 0)),
            ] + weight_specs,
            out_specs=pl.BlockSpec((block_b, N_q, C_z), lambda g, h: (g, 0, 0)),
            scratch_shapes=[
                pltpu.VMEM((block_b * N_q, C_z), jnp.float32),    # q
                pltpu.VMEM((block_b * N_kv, C_z), jnp.float32),   # k
                pltpu.VMEM((block_b * N_kv, C_z), jnp.float32),   # v
                pltpu.VMEM((block_b * N_q, C_z), jnp.float32),    # z1 (1st residual)
                pltpu.VMEM((block_b * N_q, C_z), jnp.float32),    # norm_z2(z1)
                pltpu.VMEM((block_b * N_q, C_z), jnp.float32),    # attn stage / ff acc
            ],
        ),
        compiler_params=pltpu.CompilerParams(
            dimension_semantics=("parallel", "arbitrary"),
            vmem_limit_bytes=vmem_limit,
        ),
    )(z, x, *weight_args)


def _reference(z, x, params, *, num_heads, gelu_approximate=False):
    """Pure-JAX reference mirroring the PyTorch module."""
    def ln(v, w, b):
        mu = jnp.mean(v, axis=-1, keepdims=True)
        var = jnp.mean((v - mu) ** 2, axis=-1, keepdims=True)
        return (v - mu) / jnp.sqrt(var + 1e-5) * w[0] + b[0]

    B, N_q, C = z.shape
    hd = C // num_heads
    zn = ln(z, params["nz1_w"], params["nz1_b"])
    xn = ln(x, params["nx_w"], params["nx_b"])
    q = zn @ params["wq"]
    k = xn @ params["wk"]
    v = xn @ params["wv"]
    q = q.reshape(B, N_q, num_heads, hd).transpose(0, 2, 1, 3)
    k = k.reshape(B, -1, num_heads, hd).transpose(0, 2, 1, 3)
    v = v.reshape(B, -1, num_heads, hd).transpose(0, 2, 1, 3)
    s = jnp.einsum("bhqd,bhkd->bhqk", q, k) * (hd ** -0.5)
    p = jax.nn.softmax(s, axis=-1)
    o = jnp.einsum("bhqk,bhkd->bhqd", p, v).transpose(0, 2, 1, 3).reshape(B, N_q, C)
    o = o @ params["wproj"] + params["bproj"][0]
    z1 = z + o
    zn2 = ln(z1, params["nz2_w"], params["nz2_b"])
    h = zn2 @ params["w1"] + params["b1"][0]
    h = jax.nn.gelu(h, approximate=gelu_approximate)
    return z1 + (h @ params["w2"] + params["b2"][0])


if __name__ == "__main__":
    # Small shapes consistent with the module; C_z=128 keeps output stores lane-dense.
    B, N_q, N_kv = 4, 8, 16
    dim_z, dim_x = 128, 64
    num_heads = 4                       # head_dim = 32
    hidden = 4 * dim_z                  # 512

    key = jax.random.PRNGKey(0)
    ks = jax.random.split(key, 20)

    def rnd(k, shape, s=0.05):
        return jax.random.normal(k, shape, dtype=jnp.float32) * s

    # Deterministic parameter init (Linear weights stored as (in, out)).
    # Non-trivial LN gamma/beta so the wrapper-side LN folding is actually exercised.
    params = {
        "nz1_w": 1.0 + rnd(ks[11], (1, dim_z), 0.1),
        "nz1_b": rnd(ks[12], (1, dim_z)),
        "nx_w": 1.0 + rnd(ks[13], (1, dim_x), 0.1),
        "nx_b": rnd(ks[14], (1, dim_x)),
        "wq": rnd(ks[0], (dim_z, dim_z)),
        "wk": rnd(ks[1], (dim_x, dim_z)),
        "wv": rnd(ks[2], (dim_x, dim_z)),
        "wproj": rnd(ks[3], (dim_z, dim_z)),
        "bproj": rnd(ks[4], (1, dim_z)),
        "nz2_w": 1.0 + rnd(ks[15], (1, dim_z), 0.1),
        "nz2_b": rnd(ks[16], (1, dim_z)),
        "w1": rnd(ks[5], (dim_z, hidden)),
        "b1": rnd(ks[6], (1, hidden)),
        "w2": rnd(ks[7], (hidden, dim_z)),
        "b2": rnd(ks[8], (1, dim_z)),
    }

    z = jax.random.normal(ks[9], (B, N_q, dim_z), dtype=jnp.float32)
    x = jax.random.normal(ks[10], (B, N_kv, dim_x), dtype=jnp.float32)

    # mlp_hidden_chunk=256 exercises the 2-step grid axis over the MLP hidden dim.
    out = fuse_block_forward(z, x, params, num_heads=num_heads, mlp_hidden_chunk=256)
    out = jax.block_until_ready(out)

    ref = _reference(z, x, params, num_heads=num_heads)
    assert out.shape == (B, N_q, dim_z)
    # bf16 matmul operands (f32 accumulation) + the EUP approximate reciprocal in the
    # softmax denominator cost ~1e-2-level absolute accuracy; 3e-2 still catches any
    # real structural/math bug (LN folding, head masking, residuals).
    err = float(jnp.max(jnp.abs(out - ref)))
    assert jnp.allclose(out, ref, atol=3e-2, rtol=3e-2), f"mismatch vs reference (max abs err {err})"

    print("KERNEL_OK")
</pallas_src>

<mosaic_0001>
module attributes {stable_mosaic.version = 11 : i64} {
  func.func @kernel(%arg0: i32, %arg1: i32, %arg2: memref<2x8x128xf32, #tpu.memory_space<vmem>>, %arg3: memref<2x16x64xf32, #tpu.memory_space<vmem>>, %arg4: memref<128x128xbf16, #tpu.memory_space<vmem>>, %arg5: memref<1x128xf32, #tpu.memory_space<vmem>>, %arg6: memref<64x128xbf16, #tpu.memory_space<vmem>>, %arg7: memref<1x128xf32, #tpu.memory_space<vmem>>, %arg8: memref<64x128xbf16, #tpu.memory_space<vmem>>, %arg9: memref<1x128xf32, #tpu.memory_space<vmem>>, %arg10: memref<128x128xbf16, #tpu.memory_space<vmem>>, %arg11: memref<1x128xf32, #tpu.memory_space<vmem>>, %arg12: memref<128x256xbf16, #tpu.memory_space<vmem>>, %arg13: memref<1x256xf32, #tpu.memory_space<vmem>>, %arg14: memref<256x128xbf16, #tpu.memory_space<vmem>>, %arg15: memref<1x128xf32, #tpu.memory_space<vmem>>, %arg16: memref<4x1x128xf32, #tpu.memory_space<vmem>>, %arg17: memref<2x8x128xf32, #tpu.memory_space<vmem>>, %arg18: memref<16x128xf32, #tpu.memory_space<vmem>>, %arg19: memref<32x128xf32, #tpu.memory_space<vmem>>, %arg20: memref<32x128xf32, #tpu.memory_space<vmem>>, %arg21: memref<16x128xf32, #tpu.memory_space<vmem>>, %arg22: memref<16x128xf32, #tpu.memory_space<vmem>>, %arg23: memref<16x128xf32, #tpu.memory_space<vmem>>) attributes {dimension_semantics = [#tpu.dimension_semantics<parallel>, #tpu.dimension_semantics<arbitrary>], iteration_bounds = array<i64: 2, 2>, scalar_prefetch = 0 : i64, scratch_operands = 6 : i64, tpu.core_type = #tpu.core_type<tc>, window_params = [{transform_indices = @transform_0, window_bounds = array<i64: 2, 8, 128>}, {transform_indices = @transform_1, window_bounds = array<i64: 2, 16, 64>}, {pipeline_mode = #tpu.pipeline_mode<synchronous>, transform_indices = @transform_2, window_bounds = array<i64: 128, 128>}, {pipeline_mode = #tpu.pipeline_mode<synchronous>, transform_indices = @transform_3, window_bounds = array<i64: 1, 128>}, {pipeline_mode = #tpu.pipeline_mode<synchronous>, transform_indices = @transform_4, window_bounds = array<i64: 64, 128>}, {pipeline_mode = #tpu.pipeline_mode<synchronous>, transform_indices = @transform_5, window_bounds = array<i64: 1, 128>}, {pipeline_mode = #tpu.pipeline_mode<synchronous>, transform_indices = @transform_6, window_bounds = array<i64: 64, 128>}, {pipeline_mode = #tpu.pipeline_mode<synchronous>, transform_indices = @transform_7, window_bounds = array<i64: 1, 128>}, {pipeline_mode = #tpu.pipeline_mode<synchronous>, transform_indices = @transform_8, window_bounds = array<i64: 128, 128>}, {pipeline_mode = #tpu.pipeline_mode<synchronous>, transform_indices = @transform_9, window_bounds = array<i64: 1, 128>}, {transform_indices = @transform_10, window_bounds = array<i64: 128, 256>}, {transform_indices = @transform_11, window_bounds = array<i64: 1, 256>}, {transform_indices = @transform_12, window_bounds = array<i64: 256, 128>}, {pipeline_mode = #tpu.pipeline_mode<synchronous>, transform_indices = @transform_13, window_bounds = array<i64: 1, 128>}, {pipeline_mode = #tpu.pipeline_mode<synchronous>, transform_indices = @transform_14, window_bounds = array<i64: 4, 1, 128>}, {transform_indices = @transform_15, window_bounds = array<i64: 2, 8, 128>}]} {
    %c0_i32 = arith.constant 0 : i32
    %0 = arith.cmpi eq, %arg1, %c0_i32 : i32
    %1 = arith.extui %0 : i1 to i32
    %c0_i32_0 = arith.constant 0 : i32
    %2 = arith.cmpi ne, %1, %c0_i32_0 : i32
    scf.if %2 {
      %c0_17 = arith.constant 0 : index
      %c0_18 = arith.constant 0 : index
      %c0_19 = arith.constant 0 : index
      %29 = vector.load %arg2[%c0_17, %c0_18, %c0_19] : memref<2x8x128xf32, #tpu.memory_space<vmem>>, vector<2x8x128xf32>
      %30 = vector.shape_cast %29 : vector<2x8x128xf32> to vector<16x128xf32>
      %c0_20 = arith.constant 0 : index
      %c0_21 = arith.constant 0 : index
      %c0_22 = arith.constant 0 : index
      %31 = vector.load %arg3[%c0_20, %c0_21, %c0_22] : memref<2x16x64xf32, #tpu.memory_space<vmem>>, vector<2x16x64xf32>
      %32 = vector.shape_cast %31 : vector<2x16x64xf32> to vector<32x64xf32>
      %cst_23 = arith.constant dense<0.000000e+00> : vector<16xf32>
      %33 = vector.multi_reduction <add>, %30, %cst_23 [1] : vector<16x128xf32> to vector<16xf32>
      %34 = vector.shape_cast %33 : vector<16xf32> to vector<16x1xf32>
      %cst_24 = arith.constant 1.280000e+02 : f32
      %35 = vector.broadcast %cst_24 : f32 to vector<16x1xf32>
      %36 = arith.divf %34, %35 : vector<16x1xf32>
      %37 = vector.broadcast %36 : vector<16x1xf32> to vector<16x128xf32>
      %38 = arith.subf %30, %37 : vector<16x128xf32>
      %39 = arith.mulf %38, %38 : vector<16x128xf32>
      %cst_25 = arith.constant dense<0.000000e+00> : vector<16xf32>
      %40 = vector.multi_reduction <add>, %39, %cst_25 [1] : vector<16x128xf32> to vector<16xf32>
      %41 = vector.shape_cast %40 : vector<16xf32> to vector<16x1xf32>
      %cst_26 = arith.constant 1.280000e+02 : f32
      %42 = vector.broadcast %cst_26 : f32 to vector<16x1xf32>
      %43 = arith.divf %41, %42 : vector<16x1xf32>
      %44 = vector.broadcast %36 : vector<16x1xf32> to vector<16x128xf32>
      %45 = arith.subf %30, %44 : vector<16x128xf32>
      %cst_27 = arith.constant 9.99999974E-6 : f32
      %46 = vector.broadcast %cst_27 : f32 to vector<16x1xf32>
      %47 = arith.addf %43, %46 : vector<16x1xf32>
      %48 = math.rsqrt %47 : vector<16x1xf32>
      %49 = vector.broadcast %48 : vector<16x1xf32> to vector<16x128xf32>
      %50 = arith.mulf %45, %49 : vector<16x128xf32>
      %cst_28 = arith.constant dense<0.000000e+00> : vector<32xf32>
      %51 = vector.multi_reduction <add>, %32, %cst_28 [1] : vector<32x64xf32> to vector<32xf32>
      %52 = vector.shape_cast %51 : vector<32xf32> to vector<32x1xf32>
      %cst_29 = arith.constant 6.400000e+01 : f32
      %53 = vector.broadcast %cst_29 : f32 to vector<32x1xf32>
      %54 = arith.divf %52, %53 : vector<32x1xf32>
      %55 = vector.broadcast %54 : vector<32x1xf32> to vector<32x64xf32>
      %56 = arith.subf %32, %55 : vector<32x64xf32>
      %57 = arith.mulf %56, %56 : vector<32x64xf32>
      %cst_30 = arith.constant dense<0.000000e+00> : vector<32xf32>
      %58 = vector.multi_reduction <add>, %57, %cst_30 [1] : vector<32x64xf32> to vector<32xf32>
      %59 = vector.shape_cast %58 : vector<32xf32> to vector<32x1xf32>
      %cst_31 = arith.constant 6.400000e+01 : f32
      %60 = vector.broadcast %cst_31 : f32 to vector<32x1xf32>
      %61 = arith.divf %59, %60 : vector<32x1xf32>
      %62 = vector.broadcast %54 : vector<32x1xf32> to vector<32x64xf32>
      %63 = arith.subf %32, %62 : vector<32x64xf32>
      %cst_32 = arith.constant 9.99999974E-6 : f32
      %64 = vector.broadcast %cst_32 : f32 to vector<32x1xf32>
      %65 = arith.addf %61, %64 : vector<32x1xf32>
      %66 = math.rsqrt %65 : vector<32x1xf32>
      %67 = vector.broadcast %66 : vector<32x1xf32> to vector<32x64xf32>
      %68 = arith.mulf %63, %67 : vector<32x64xf32>
      %c0_33 = arith.constant 0 : index
      %c0_34 = arith.constant 0 : index
      %69 = vector.load %arg4[%c0_33, %c0_34] : memref<128x128xbf16, #tpu.memory_space<vmem>>, vector<128x128xbf16>
      %70 = arith.truncf %50 : vector<16x128xf32> to vector<16x128xbf16>
      %cst_35 = arith.constant dense<0.000000e+00> : vector<16x128xf32>
      %71 = tpu.matmul %70, %69, %cst_35 {dimension_numbers = #tpu.dot_dimension_numbers<[1], [0], [0], [1], [0, 0, 1, 1], [], []>} : vector<16x128xbf16>, vector<128x128xbf16>, vector<16x128xf32> -> vector<16x128xf32>
      %c0_36 = arith.constant 0 : index
      %c0_37 = arith.constant 0 : index
      %72 = vector.load %arg5[%c0_36, %c0_37] : memref<1x128xf32, #tpu.memory_space<vmem>>, vector<1x128xf32>
      %73 = vector.shape_cast %72 : vector<1x128xf32> to vector<128xf32>
      %74 = vector.shape_cast %73 : vector<128xf32> to vector<1x128xf32>
      %75 = vector.broadcast %74 : vector<1x128xf32> to vector<16x128xf32>
      %76 = arith.addf %71, %75 : vector<16x128xf32>
      %c0_38 = arith.constant 0 : index
      %c0_39 = arith.constant 0 : index
      %77 = vector.load %arg18[%c0_38, %c0_39] : memref<16x128xf32, #tpu.memory_space<vmem>>, vector<16x128xf32>
      tpu.vector_store %arg18[%c0_38, %c0_39], %76 {strides = array<i32>} : memref<16x128xf32, #tpu.memory_space<vmem>>, vector<16x128xf32>,
      %c0_40 = arith.constant 0 : index
      %c0_41 = arith.constant 0 : index
      %78 = vector.load %arg6[%c0_40, %c0_41] : memref<64x128xbf16, #tpu.memory_space<vmem>>, vector<64x128xbf16>
      %79 = arith.truncf %68 : vector<32x64xf32> to vector<32x64xbf16>
      %cst_42 = arith.constant dense<0.000000e+00> : vector<32x128xf32>
      %80 = tpu.matmul %79, %78, %cst_42 {dimension_numbers = #tpu.dot_dimension_numbers<[1], [0], [0], [1], [0, 0, 1, 1], [], []>} : vector<32x64xbf16>, vector<64x128xbf16>, vector<32x128xf32> -> vector<32x128xf32>
      %c0_43 = arith.constant 0 : index
      %c0_44 = arith.constant 0 : index
      %81 = vector.load %arg7[%c0_43, %c0_44] : memref<1x128xf32, #tpu.memory_space<vmem>>, vector<1x128xf32>
      %82 = vector.shape_cast %81 : vector<1x128xf32> to vector<128xf32>
      %83 = vector.shape_cast %82 : vector<128xf32> to vector<1x128xf32>
      %84 = vector.broadcast %83 : vector<1x128xf32> to vector<32x128xf32>
      %85 = arith.addf %80, %84 : vector<32x128xf32>
      %c0_45 = arith.constant 0 : index
      %c0_46 = arith.constant 0 : index
      %86 = vector.load %arg19[%c0_45, %c0_46] : memref<32x128xf32, #tpu.memory_space<vmem>>, vector<32x128xf32>
      tpu.vector_store %arg19[%c0_45, %c0_46], %85 {strides = array<i32>} : memref<32x128xf32, #tpu.memory_space<vmem>>, vector<32x128xf32>,
      %c0_47 = arith.constant 0 : index
      %c0_48 = arith.constant 0 : index
      %87 = vector.load %arg8[%c0_47, %c0_48] : memref<64x128xbf16, #tpu.memory_space<vmem>>, vector<64x128xbf16>
      %88 = arith.truncf %68 : vector<32x64xf32> to vector<32x64xbf16>
      %cst_49 = arith.constant dense<0.000000e+00> : vector<32x128xf32>
      %89 = tpu.matmul %88, %87, %cst_49 {dimension_numbers = #tpu.dot_dimension_numbers<[1], [0], [0], [1], [0, 0, 1, 1], [], []>} : vector<32x64xbf16>, vector<64x128xbf16>, vector<32x128xf32> -> vector<32x128xf32>
      %c0_50 = arith.constant 0 : index
      %c0_51 = arith.constant 0 : index
      %90 = vector.load %arg9[%c0_50, %c0_51] : memref<1x128xf32, #tpu.memory_space<vmem>>, vector<1x128xf32>
      %91 = vector.shape_cast %90 : vector<1x128xf32> to vector<128xf32>
      %92 = vector.shape_cast %91 : vector<128xf32> to vector<1x128xf32>
      %93 = vector.broadcast %92 : vector<1x128xf32> to vector<32x128xf32>
      %94 = arith.addf %89, %93 : vector<32x128xf32>
      %c0_52 = arith.constant 0 : index
      %c0_53 = arith.constant 0 : index
      %95 = vector.load %arg20[%c0_52, %c0_53] : memref<32x128xf32, #tpu.memory_space<vmem>>, vector<32x128xf32>
      tpu.vector_store %arg20[%c0_52, %c0_53], %94 {strides = array<i32>} : memref<32x128xf32, #tpu.memory_space<vmem>>, vector<32x128xf32>,
      %c0_54 = arith.constant 0 : index
      %c0_55 = arith.constant 0 : index
      %c0_56 = arith.constant 0 : index
      %96 = vector.load %arg16[%c0_54, %c0_55, %c0_56] : memref<4x1x128xf32, #tpu.memory_space<vmem>>, vector<4x1x128xf32>
      %c0_i32_57 = arith.constant 0 : i32
      %c2_i32 = arith.constant 2 : i32
      %97 = arith.addi %c0_i32_57, %c2_i32 : i32
      %c1_i32_58 = arith.constant 1 : i32
      scf.for %arg24 = %c0_i32_57 to %97 step %c1_i32_58  : i32 {
        %c8_i32 = arith.constant 8 : i32
        %130 = arith.muli %arg24, %c8_i32 : i32
        %131 = tpu.assume_multiple %130, 8 : i32
        %c16_i32 = arith.constant 16 : i32
        %132 = arith.muli %arg24, %c16_i32 : i32
        %133 = tpu.assume_multiple %132, 16 : i32
        %134 = arith.index_cast %131 : i32 to index
        %c0_79 = arith.constant 0 : index
        %135 = vector.load %arg18[%134, %c0_79] : memref<16x128xf32, #tpu.memory_space<vmem>>, vector<8x128xf32>
        %136 = arith.index_cast %133 : i32 to index
        %c0_80 = arith.constant 0 : index
        %137 = vector.load %arg19[%136, %c0_80] : memref<32x128xf32, #tpu.memory_space<vmem>>, vector<16x128xf32>
        %138 = arith.index_cast %133 : i32 to index
        %c0_81 = arith.constant 0 : index
        %139 = vector.load %arg20[%138, %c0_81] : memref<32x128xf32, #tpu.memory_space<vmem>>, vector<16x128xf32>
        %140 = vector.shape_cast %135 : vector<8x128xf32> to vector<1x8x128xf32>
        %141 = vector.broadcast %96 : vector<4x1x128xf32> to vector<4x8x128xf32>
        %142 = vector.broadcast %140 : vector<1x8x128xf32> to vector<4x8x128xf32>
        %143 = arith.mulf %141, %142 : vector<4x8x128xf32>
        %144 = vector.shape_cast %143 : vector<4x8x128xf32> to vector<32x128xf32>
        %145 = arith.truncf %144 : vector<32x128xf32> to vector<32x128xbf16>
        %146 = arith.truncf %137 : vector<16x128xf32> to vector<16x128xbf16>
        %cst_82 = arith.constant dense<0.000000e+00> : vector<32x16xf32>
        %147 = tpu.matmul %145, %146, %cst_82 {dimension_numbers = #tpu.dot_dimension_numbers<[1], [1], [0], [0], [0, 0, 1, 0], [], []>} : vector<32x128xbf16>, vector<16x128xbf16>, vector<32x16xf32> -> vector<32x16xf32>
        %cst_83 = arith.constant dense<0xFF800000> : vector<32xf32>
        %148 = vector.multi_reduction <maximumf>, %147, %cst_83 [1] : vector<32x16xf32> to vector<32xf32>
        %149 = vector.shape_cast %148 : vector<32xf32> to vector<32x1xf32>
        %150 = vector.broadcast %149 : vector<32x1xf32> to vector<32x16xf32>
        %151 = arith.subf %147, %150 : vector<32x16xf32>
        %152 = math.exp %151 : vector<32x16xf32>
        %cst_84 = arith.constant dense<0.000000e+00> : vector<32xf32>
        %153 = vector.multi_reduction <add>, %152, %cst_84 [1] : vector<32x16xf32> to vector<32xf32>
        %154 = vector.shape_cast %153 : vector<32xf32> to vector<32x1xf32>
        %155 = tpu.reciprocal %154 {approx = true} : vector<32x1xf32> -> vector<32x1xf32>
        %156 = vector.broadcast %155 : vector<32x1xf32> to vector<32x16xf32>
        %157 = arith.mulf %152, %156 : vector<32x16xf32>
        %158 = arith.truncf %157 : vector<32x16xf32> to vector<32x16xbf16>
        %159 = arith.truncf %139 : vector<16x128xf32> to vector<16x128xbf16>
        %cst_85 = arith.constant dense<0.000000e+00> : vector<32x128xf32>
        %160 = tpu.matmul %158, %159, %cst_85 {dimension_numbers = #tpu.dot_dimension_numbers<[1], [0], [0], [1], [0, 0, 1, 1], [], []>} : vector<32x16xbf16>, vector<16x128xbf16>, vector<32x128xf32> -> vector<32x128xf32>
        %161 = vector.shape_cast %160 : vector<32x128xf32> to vector<4x8x128xf32>
        %162 = vector.broadcast %96 : vector<4x1x128xf32> to vector<4x8x128xf32>
        %163 = arith.mulf %161, %162 : vector<4x8x128xf32>
        %cst_86 = arith.constant dense<0.000000e+00> : vector<8x128xf32>
        %164 = vector.multi_reduction <add>, %163, %cst_86 [0] : vector<4x8x128xf32> to vector<8x128xf32>
        %165 = arith.index_cast %131 : i32 to index
        %c0_87 = arith.constant 0 : index
        %166 = vector.load %arg23[%165, %c0_87] : memref<16x128xf32, #tpu.memory_space<vmem>>, vector<8x128xf32>
        tpu.vector_store %arg23[%165, %c0_87], %164 {strides = array<i32>} : memref<16x128xf32, #tpu.memory_space<vmem>>, vector<8x128xf32>,
      }
      %c2_i32_59 = arith.constant 2 : i32
      %c0_60 = arith.constant 0 : index
      %c0_61 = arith.constant 0 : index
      %98 = vector.load %arg23[%c0_60, %c0_61] : memref<16x128xf32, #tpu.memory_space<vmem>>, vector<16x128xf32>
      %c0_62 = arith.constant 0 : index
      %c0_63 = arith.constant 0 : index
      %99 = vector.load %arg10[%c0_62, %c0_63] : memref<128x128xbf16, #tpu.memory_space<vmem>>, vector<128x128xbf16>
      %100 = arith.truncf %98 : vector<16x128xf32> to vector<16x128xbf16>
      %cst_64 = arith.constant dense<0.000000e+00> : vector<16x128xf32>
      %101 = tpu.matmul %100, %99, %cst_64 {dimension_numbers = #tpu.dot_dimension_numbers<[1], [0], [0], [1], [0, 0, 1, 1], [], []>} : vector<16x128xbf16>, vector<128x128xbf16>, vector<16x128xf32> -> vector<16x128xf32>
      %c0_65 = arith.constant 0 : index
      %c0_66 = arith.constant 0 : index
      %102 = vector.load %arg11[%c0_65, %c0_66] : memref<1x128xf32, #tpu.memory_space<vmem>>, vector<1x128xf32>
      %103 = vector.shape_cast %102 : vector<1x128xf32> to vector<128xf32>
      %104 = vector.shape_cast %103 : vector<128xf32> to vector<1x128xf32>
      %105 = vector.broadcast %104 : vector<1x128xf32> to vector<16x128xf32>
      %106 = arith.addf %101, %105 : vector<16x128xf32>
      %107 = arith.addf %30, %106 : vector<16x128xf32>
      %c0_67 = arith.constant 0 : index
      %c0_68 = arith.constant 0 : index
      %108 = vector.load %arg21[%c0_67, %c0_68] : memref<16x128xf32, #tpu.memory_space<vmem>>, vector<16x128xf32>
      tpu.vector_store %arg21[%c0_67, %c0_68], %107 {strides = array<i32>} : memref<16x128xf32, #tpu.memory_space<vmem>>, vector<16x128xf32>,
      %cst_69 = arith.constant dense<0.000000e+00> : vector<16xf32>
      %109 = vector.multi_reduction <add>, %107, %cst_69 [1] : vector<16x128xf32> to vector<16xf32>
      %110 = vector.shape_cast %109 : vector<16xf32> to vector<16x1xf32>
      %cst_70 = arith.constant 1.280000e+02 : f32
      %111 = vector.broadcast %cst_70 : f32 to vector<16x1xf32>
      %112 = arith.divf %110, %111 : vector<16x1xf32>
      %113 = vector.broadcast %112 : vector<16x1xf32> to vector<16x128xf32>
      %114 = arith.subf %107, %113 : vector<16x128xf32>
      %115 = arith.mulf %114, %114 : vector<16x128xf32>
      %cst_71 = arith.constant dense<0.000000e+00> : vector<16xf32>
      %116 = vector.multi_reduction <add>, %115, %cst_71 [1] : vector<16x128xf32> to vector<16xf32>
      %117 = vector.shape_cast %116 : vector<16xf32> to vector<16x1xf32>
      %cst_72 = arith.constant 1.280000e+02 : f32
      %118 = vector.broadcast %cst_72 : f32 to vector<16x1xf32>
      %119 = arith.divf %117, %118 : vector<16x1xf32>
      %120 = vector.broadcast %112 : vector<16x1xf32> to vector<16x128xf32>
      %121 = arith.subf %107, %120 : vector<16x128xf32>
      %cst_73 = arith.constant 9.99999974E-6 : f32
      %122 = vector.broadcast %cst_73 : f32 to vector<16x1xf32>
      %123 = arith.addf %119, %122 : vector<16x1xf32>
      %124 = math.rsqrt %123 : vector<16x1xf32>
      %125 = vector.broadcast %124 : vector<16x1xf32> to vector<16x128xf32>
      %126 = arith.mulf %121, %125 : vector<16x128xf32>
      %c0_74 = arith.constant 0 : index
      %c0_75 = arith.constant 0 : index
      %127 = vector.load %arg22[%c0_74, %c0_75] : memref<16x128xf32, #tpu.memory_space<vmem>>, vector<16x128xf32>
      tpu.vector_store %arg22[%c0_74, %c0_75], %126 {strides = array<i32>} : memref<16x128xf32, #tpu.memory_space<vmem>>, vector<16x128xf32>,
      %cst_76 = arith.constant 0.000000e+00 : f32
      %128 = vector.broadcast %cst_76 : f32 to vector<16x128xf32>
      %c0_77 = arith.constant 0 : index
      %c0_78 = arith.constant 0 : index
      %129 = vector.load %arg23[%c0_77, %c0_78] : memref<16x128xf32, #tpu.memory_space<vmem>>, vector<16x128xf32>
      tpu.vector_store %arg23[%c0_77, %c0_78], %128 {strides = array<i32>} : memref<16x128xf32, #tpu.memory_space<vmem>>, vector<16x128xf32>,
    } else {
    }
    %c0 = arith.constant 0 : index
    %c0_1 = arith.constant 0 : index
    %3 = vector.load %arg22[%c0, %c0_1] : memref<16x128xf32, #tpu.memory_space<vmem>>, vector<16x128xf32>
    %c0_2 = arith.constant 0 : index
    %c0_3 = arith.constant 0 : index
    %4 = vector.load %arg12[%c0_2, %c0_3] : memref<128x256xbf16, #tpu.memory_space<vmem>>, vector<128x256xbf16>
    %5 = arith.truncf %3 : vector<16x128xf32> to vector<16x128xbf16>
    %cst = arith.constant dense<0.000000e+00> : vector<16x256xf32>
    %6 = tpu.matmul %5, %4, %cst {dimension_numbers = #tpu.dot_dimension_numbers<[1], [0], [0], [1], [0, 0, 1, 1], [], []>} : vector<16x128xbf16>, vector<128x256xbf16>, vector<16x256xf32> -> vector<16x256xf32>
    %c0_4 = arith.constant 0 : index
    %c0_5 = arith.constant 0 : index
    %7 = vector.load %arg13[%c0_4, %c0_5] : memref<1x256xf32, #tpu.memory_space<vmem>>, vector<1x256xf32>
    %8 = vector.shape_cast %7 : vector<1x256xf32> to vector<256xf32>
    %9 = vector.shape_cast %8 : vector<256xf32> to vector<1x256xf32>
    %10 = vector.broadcast %9 : vector<1x256xf32> to vector<16x256xf32>
    %11 = arith.addf %6, %10 : vector<16x256xf32>
    %c0_6 = arith.constant 0 : index
    %c0_7 = arith.constant 0 : index
    %12 = vector.load %arg23[%c0_6, %c0_7] : memref<16x128xf32, #tpu.memory_space<vmem>>, vector<16x128xf32>
    %cst_8 = arith.constant 5.000000e-01 : f32
    %13 = vector.broadcast %cst_8 : f32 to vector<16x256xf32>
    %14 = arith.mulf %13, %11 : vector<16x256xf32>
    %cst_9 = arith.constant 0.707106769 : f32
    %15 = vector.broadcast %cst_9 : f32 to vector<16x256xf32>
    %16 = arith.mulf %11, %15 : vector<16x256xf32>
    %17 = math.erf %16 : vector<16x256xf32>
    %cst_10 = arith.constant 1.000000e+00 : f32
    %18 = vector.broadcast %cst_10 : f32 to vector<16x256xf32>
    %19 = arith.addf %18, %17 : vector<16x256xf32>
    %20 = arith.mulf %14, %19 : vector<16x256xf32>
    %c0_11 = arith.constant 0 : index
    %c0_12 = arith.constant 0 : index
    %21 = vector.load %arg14[%c0_11, %c0_12] : memref<256x128xbf16, #tpu.memory_space<vmem>>, vector<256x128xbf16>
    %22 = arith.truncf %20 : vector<16x256xf32> to vector<16x256xbf16>
    %cst_13 = arith.constant dense<0.000000e+00> : vector<16x128xf32>
    %23 = tpu.matmul %22, %21, %cst_13 {dimension_numbers = #tpu.dot_dimension_numbers<[1], [0], [0], [1], [0, 0, 1, 1], [], []>} : vector<16x256xbf16>, vector<256x128xbf16>, vector<16x128xf32> -> vector<16x128xf32>
    %24 = arith.addf %12, %23 : vector<16x128xf32>
    %c0_14 = arith.constant 0 : index
    %c0_15 = arith.constant 0 : index
    %25 = vector.load %arg23[%c0_14, %c0_15] : memref<16x128xf32, #tpu.memory_space<vmem>>, vector<16x128xf32>
    tpu.vector_store %arg23[%c0_14, %c0_15], %24 {strides = array<i32>} : memref<16x128xf32, #tpu.memory_space<vmem>>, vector<16x128xf32>,
    %c1_i32 = arith.constant 1 : i32
    %26 = arith.cmpi eq, %arg1, %c1_i32 : i32
    %27 = arith.extui %26 : i1 to i32
    %c0_i32_16 = arith.constant 0 : i32
    %28 = arith.cmpi ne, %27, %c0_i32_16 : i32
    scf.if %28 {
      %c0_17 = arith.constant 0 : index
      %c0_18 = arith.constant 0 : index
      %29 = vector.load %arg21[%c0_17, %c0_18] : memref<16x128xf32, #tpu.memory_space<vmem>>, vector<16x128xf32>
      %c0_19 = arith.constant 0 : index
      %c0_20 = arith.constant 0 : index
      %30 = vector.load %arg23[%c0_19, %c0_20] : memref<16x128xf32, #tpu.memory_space<vmem>>, vector<16x128xf32>
      %31 = arith.addf %29, %30 : vector<16x128xf32>
      %c0_21 = arith.constant 0 : index
      %c0_22 = arith.constant 0 : index
      %32 = vector.load %arg15[%c0_21, %c0_22] : memref<1x128xf32, #tpu.memory_space<vmem>>, vector<1x128xf32>
      %33 = vector.shape_cast %32 : vector<1x128xf32> to vector<128xf32>
      %34 = vector.shape_cast %33 : vector<128xf32> to vector<1x128xf32>
      %35 = vector.broadcast %34 : vector<1x128xf32> to vector<16x128xf32>
      %36 = arith.addf %31, %35 : vector<16x128xf32>
      %37 = vector.shape_cast %36 : vector<16x128xf32> to vector<2x8x128xf32>
      %c0_23 = arith.constant 0 : index
      %c0_24 = arith.constant 0 : index
      %c0_25 = arith.constant 0 : index
      %38 = vector.load %arg17[%c0_23, %c0_24, %c0_25] : memref<2x8x128xf32, #tpu.memory_space<vmem>>, vector<2x8x128xf32>
      tpu.vector_store %arg17[%c0_23, %c0_24, %c0_25], %37 {strides = array<i32>} : memref<2x8x128xf32, #tpu.memory_space<vmem>>, vector<2x8x128xf32>,
    } else {
    }
    return
  }
  func.func @transform_0(%arg0: i32, %arg1: i32) -> (i32, i32, i32) {
    %c0_i32 = arith.constant 0 : i32
    %c0_i32_0 = arith.constant 0 : i32
    %c0_i32_1 = arith.constant 0 : i32
    return %arg0, %c0_i32, %c0_i32_0 : i32, i32, i32
  }
  func.func @transform_1(%arg0: i32, %arg1: i32) -> (i32, i32, i32) {
    %c0_i32 = arith.constant 0 : i32
    %c0_i32_0 = arith.constant 0 : i32
    %c0_i32_1 = arith.constant 0 : i32
    return %arg0, %c0_i32, %c0_i32_0 : i32, i32, i32
  }
  func.func @transform_2(%arg0: i32, %arg1: i32) -> (i32, i32) {
    %c0_i32 = arith.constant 0 : i32
    %c0_i32_0 = arith.constant 0 : i32
    %c0_i32_1 = arith.constant 0 : i32
    return %c0_i32, %c0_i32_0 : i32, i32
  }
  func.func @transform_3(%arg0: i32, %arg1: i32) -> (i32, i32) {
    %c0_i32 = arith.constant 0 : i32
    %c0_i32_0 = arith.constant 0 : i32
    %c0_i32_1 = arith.constant 0 : i32
    return %c0_i32, %c0_i32_0 : i32, i32
  }
  func.func @transform_4(%arg0: i32, %arg1: i32) -> (i32, i32) {
    %c0_i32 = arith.constant 0 : i32
    %c0_i32_0 = arith.constant 0 : i32
    %c0_i32_1 = arith.constant 0 : i32
    return %c0_i32, %c0_i32_0 : i32, i32
  }
  func.func @transform_5(%arg0: i32, %arg1: i32) -> (i32, i32) {
    %c0_i32 = arith.constant 0 : i32
    %c0_i32_0 = arith.constant 0 : i32
    %c0_i32_1 = arith.constant 0 : i32
    return %c0_i32, %c0_i32_0 : i32, i32
  }
  func.func @transform_6(%arg0: i32, %arg1: i32) -> (i32, i32) {
    %c0_i32 = arith.constant 0 : i32
    %c0_i32_0 = arith.constant 0 : i32
    %c0_i32_1 = arith.constant 0 : i32
    return %c0_i32, %c0_i32_0 : i32, i32
  }
  func.func @transform_7(%arg0: i32, %arg1: i32) -> (i32, i32) {
    %c0_i32 = arith.constant 0 : i32
    %c0_i32_0 = arith.constant 0 : i32
    %c0_i32_1 = arith.constant 0 : i32
    return %c0_i32, %c0_i32_0 : i32, i32
  }
  func.func @transform_8(%arg0: i32, %arg1: i32) -> (i32, i32) {
    %c0_i32 = arith.constant 0 : i32
    %c0_i32_0 = arith.constant 0 : i32
    %c0_i32_1 = arith.constant 0 : i32
    return %c0_i32, %c0_i32_0 : i32, i32
  }
  func.func @transform_9(%arg0: i32, %arg1: i32) -> (i32, i32) {
    %c0_i32 = arith.constant 0 : i32
    %c0_i32_0 = arith.constant 0 : i32
    %c0_i32_1 = arith.constant 0 : i32
    return %c0_i32, %c0_i32_0 : i32, i32
  }
  func.func @transform_10(%arg0: i32, %arg1: i32) -> (i32, i32) {
    %c0_i32 = arith.constant 0 : i32
    %c0_i32_0 = arith.constant 0 : i32
    return %c0_i32, %arg1 : i32, i32
  }
  func.func @transform_11(%arg0: i32, %arg1: i32) -> (i32, i32) {
    %c0_i32 = arith.constant 0 : i32
    %c0_i32_0 = arith.constant 0 : i32
    return %c0_i32, %arg1 : i32, i32
  }
  func.func @transform_12(%arg0: i32, %arg1: i32) -> (i32, i32) {
    %c0_i32 = arith.constant 0 : i32
    %c0_i32_0 = arith.constant 0 : i32
    return %arg1, %c0_i32 : i32, i32
  }
  func.func @transform_13(%arg0: i32, %arg1: i32) -> (i32, i32) {
    %c0_i32 = arith.constant 0 : i32
    %c0_i32_0 = arith.constant 0 : i32
    %c0_i32_1 = arith.constant 0 : i32
    return %c0_i32, %c0_i32_0 : i32, i32
  }
  func.func @transform_14(%arg0: i32, %arg1: i32) -> (i32, i32, i32) {
    %c0_i32 = arith.constant 0 : i32
    %c0_i32_0 = arith.constant 0 : i32
    %c0_i32_1 = arith.constant 0 : i32
    %c0_i32_2 = arith.constant 0 : i32
    return %c0_i32, %c0_i32_0, %c0_i32_1 : i32, i32, i32
  }
  func.func @transform_15(%arg0: i32, %arg1: i32) -> (i32, i32, i32) {
    %c0_i32 = arith.constant 0 : i32
    %c0_i32_0 = arith.constant 0 : i32
    %c0_i32_1 = arith.constant 0 : i32
    return %arg0, %c0_i32, %c0_i32_0 : i32, i32, i32
  }
}

</mosaic_0001>

<llo_original>
// kernel: tpu_custom_call.1
$region0: #{tpu_custom_call.1}
  #allocation0 [shape = 'u32[]', space=smem, size = 0x4, offset = 0x4, fixed_abs, tag = 'smem constant byte address 0x4 - core index']
  #allocation1 [shape = 'u32[72,128]{1,0:T(1,128)}', space=vmem, size = 0x9000, scoped, tag = 'internal scratch']
  #allocation2 [shape = 'f32[16,128]{1,0:T(8,128)}', space=vmem, size = 0x2000, scoped, tag = 'scratch operand']
  #allocation3 [shape = 'f32[32,128]{1,0:T(8,128)}', space=vmem, size = 0x4000, scoped, tag = 'scratch operand']
  #allocation4 [shape = 'f32[32,128]{1,0:T(8,128)}', space=vmem, size = 0x4000, scoped, tag = 'scratch operand']
  #allocation5 [shape = 'f32[16,128]{1,0:T(8,128)}', space=vmem, size = 0x2000, scoped, tag = 'scratch operand']
  #allocation6 [shape = 'f32[16,128]{1,0:T(8,128)}', space=vmem, size = 0x2000, scoped, tag = 'scratch operand']
  #allocation7 [shape = 'f32[16,128]{1,0:T(8,128)}', space=vmem, size = 0x2000, scoped, tag = 'scratch operand']
  %s0 = inlined_call_operand.hbm [shape: f32[4,8,128], index: 0, kind: input, shape index: {}]
  %s1 = inlined_call_operand.hbm [shape: f32[4,16,64], index: 1, kind: input, shape index: {}]
  %s2 = inlined_call_operand.hbm [shape: bf16[128,128], index: 2, kind: input, shape index: {}]
  %s3 = inlined_call_operand.hbm [shape: f32[1,128], index: 3, kind: input, shape index: {}]
  %s4 = inlined_call_operand.hbm [shape: bf16[64,128], index: 4, kind: input, shape index: {}]
  %s5 = inlined_call_operand.hbm [shape: f32[1,128], index: 5, kind: input, shape index: {}]
  %s6 = inlined_call_operand.hbm [shape: bf16[64,128], index: 6, kind: input, shape index: {}]
  %s7 = inlined_call_operand.hbm [shape: f32[1,128], index: 7, kind: input, shape index: {}]
  %s8 = inlined_call_operand.hbm [shape: bf16[128,128], index: 8, kind: input, shape index: {}]
  %s9 = inlined_call_operand.hbm [shape: f32[1,128], index: 9, kind: input, shape index: {}]
  %s10 = inlined_call_operand.hbm [shape: bf16[128,512], index: 10, kind: input, shape index: {}]
  %s11 = inlined_call_operand.vmem [shape: f32[1,512], index: 11, kind: input, shape index: {}]
  %s12 = inlined_call_operand.hbm [shape: bf16[512,128], index: 12, kind: input, shape index: {}]
  %s13 = inlined_call_operand.vmem [shape: f32[1,128], index: 13, kind: input, shape index: {}]
  %s14 = inlined_call_operand.vmem [shape: f32[4,1,128], index: 14, kind: input, shape index: {}]
  %s15 = inlined_call_operand.hbm [shape: f32[4,8,128], index: 15, kind: output, shape index: {}]
  %s16 = sld [smem:[#allocation0]]
  $region156: #{tpu_custom_call.1} parent=0
    _
  %s18 = ssub.s32 1, %s16
  %s19 = scalar_select 0, %s18, %s16
  $region1: #{tpu_custom_call.1} parent=0
    #allocation8 [shape = 'u8[16384]{0}', space=vmem, size = 0x4000, scoped, tag = 'input window, operand 0']
    #allocation9 [shape = 's32[2]{0}', space=sflag, size = 0x8, scoped, tag = 'scoped memory for tpu_custom_call.1']
    #allocation10 [shape = 's32[2]{0}', space=sflag, size = 0x8, scoped, tag = 'scoped memory for tpu_custom_call.1']
    #allocation11 [shape = 'u8[32768]{0}', space=vmem, size = 0x8000, scoped, tag = 'input window, operand 1']
    #allocation12 [shape = 's32[2]{0}', space=sflag, size = 0x8, scoped, tag = 'scoped memory for tpu_custom_call.1']
    #allocation13 [shape = 'u8[32768]{0}', space=vmem, size = 0x8000, scoped, tag = 'input window, operand 2, single buffered']
    #allocation14 [shape = 'u8[512]{0}', space=vmem, size = 0x400, scoped, tag = 'input window, operand 3, single buffered']
    #allocation15 [shape = 's32[1]{0}', space=sflag, size = 0x4, scoped, tag = 'scoped memory for tpu_custom_call.1']
    #allocation16 [shape = 'u8[16384]{0}', space=vmem, size = 0x4000, scoped, tag = 'input window, operand 4, single buffered']
    #allocation17 [shape = 'u8[512]{0}', space=vmem, size = 0x400, scoped, tag = 'input window, operand 5, single buffered']
    #allocation18 [shape = 's32[1]{0}', space=sflag, size = 0x4, scoped, tag = 'scoped memory for tpu_custom_call.1']
    #allocation19 [shape = 'u8[16384]{0}', space=vmem, size = 0x4000, scoped, tag = 'input window, operand 6, single buffered']
    #allocation20 [shape = 'u8[512]{0}', space=vmem, size = 0x400, scoped, tag = 'input window, operand 7, single buffered']
    #allocation21 [shape = 's32[1]{0}', space=sflag, size = 0x4, scoped, tag = 'scoped memory for tpu_custom_call.1']
    #allocation22 [shape = 'u8[32768]{0}', space=vmem, size = 0x8000, scoped, tag = 'input window, operand 8, single buffered']
    #allocation23 [shape = 'u8[512]{0}', space=vmem, size = 0x400, scoped, tag = 'input window, operand 9, single buffered']
    #allocation24 [shape = 's32[1]{0}', space=sflag, size = 0x4, scoped, tag = 'scoped memory for tpu_custom_call.1']
    #allocation25 [shape = 'u8[131072]{0}', space=vmem, size = 0x20000, scoped, tag = 'input window, operand 10']
    #allocation26 [shape = 'u8[131072]{0}', space=vmem, size = 0x20000, scoped, tag = 'input window, operand 12']
    #allocation27 [shape = 'u8[16384]{0}', space=vmem, size = 0x4000, scoped, tag = 'output window, operand 0']
    %20 = vsyncpa [#allocation9], 0
    %s21 = scalar_lea.sflag [#allocation9], 1
    %22 = vsyncpa %s21, 0
    %23 = vsyncpa [#allocation12], 0
    %s24 = scalar_lea.sflag [#allocation12], 1
    %25 = vsyncpa %s24, 0
    %26 = vsyncpa [#allocation15], 0
    %27 = vsyncpa [#allocation18], 0
    %28 = vsyncpa [#allocation21], 0
    %29 = vsyncpa [#allocation24], 0
    %30 = vsyncpa [#allocation10], 0
    %s31 = scalar_lea.sflag [#allocation10], 1
    %32 = vsyncpa %s31, 0
    loop: start=0, step=1, limit=6
    $region2: #{tpu_custom_call.1} parent=1 // loop_pre_header
      _
    $region3: #{tpu_custom_call.1} parent=1 // loop_header
      %s34 = sphi 0, %s38
      %p35 = scmp.ge.s32.totalorder %s34, 6
      %s41 = sphi 0, %s53
      %s42 = sphi 0, %s49
      %s43 = sphi 0, %s41
      %s44 = sphi 0, %s42
      %s45 = sphi 0, %s43
      %s46 = sphi 0, %s44
      %s56 = sphi 0, %s58
      %s59 = sphi 0, %s56
      %s60 = sphi 0, %s59
      %s76 = sphi 0, %s60
      %s82 = sphi 0, %s84
      %s85 = sphi 0, %s82
      %s86 = sphi 0, %s85
      %s102 = sphi 0, %s86
      %s106 = sphi 0, %s106
      %s108 = sphi 0, %s106
      %s109 = sphi 0, %s108
      %s123 = sphi 0, %s109
      %s127 = sphi 0, %s127
      %s129 = sphi 0, %s127
      %s130 = sphi 0, %s129
      %s144 = sphi 0, %s130
      %s148 = sphi 0, %s148
      %s150 = sphi 0, %s148
      %s151 = sphi 0, %s150
      %s165 = sphi 0, %s151
      %s169 = sphi 0, %s169
      %s171 = sphi 0, %s169
      %s172 = sphi 0, %s171
      %s186 = sphi 0, %s172
      %s190 = sphi 0, %s190
      %s192 = sphi 0, %s190
      %s193 = sphi 0, %s192
      %s207 = sphi 0, %s193
      %s211 = sphi 0, %s211
      %s213 = sphi 0, %s211
      %s214 = sphi 0, %s213
      %s228 = sphi 0, %s214
      %s232 = sphi 0, %s232
      %s234 = sphi 0, %s232
      %s235 = sphi 0, %s234
      %s249 = sphi 0, %s235
      %s253 = sphi 0, %s253
      %s255 = sphi 0, %s253
      %s256 = sphi 0, %s255
      %s270 = sphi 0, %s256
      %s276 = sphi 0, %s278
      %s279 = sphi 0, %s276
      %s280 = sphi 0, %s279
      %s296 = sphi 0, %s280
      %s302 = sphi 0, %s304
      %s305 = sphi 0, %s302
      %s306 = sphi 0, %s305
      %s322 = sphi 0, %s306
      %s328 = sphi 0, %s330
      %s331 = sphi 0, %s328
      %s332 = sphi 0, %s331
      %s348 = sphi 0, %s332
      %s352 = sphi 0, %s352
      %s354 = sphi 0, %s352
      %s355 = sphi 0, %s354
      %s369 = sphi 0, %s355
      %s373 = sphi 0, %s373
      %s375 = sphi 0, %s373
      %s376 = sphi 0, %s375
      %s390 = sphi 0, %s376
      %s396 = sphi 0, %s398
      %s399 = sphi 0, %s396
      %s400 = sphi 0, %s399
      %s416 = sphi 0, %s400
    $region4: #{tpu_custom_call.1} parent=1 // loop_header_branch
      %37 = sbr.rel (%p35) target = $region8
    $region5: #{tpu_custom_call.1} parent=1 // loop_body
      %s39 = ssub.s32 %s34, 1
      %s40 = ssub.s32 %s34, 2
      %s47 = sadd.s32 1, %s42
      %p48 = scmp.ge.s32.totalorder %s47, 2
      %s49 = scalar_select %p48, 0, %s47
      %s50 = sadd.s32 1, %s41
      %s51 = scalar_select %p48, %s50, %s41
      %p52 = scmp.ge.s32.totalorder %s51, 2
      %s53 = scalar_select %p52, 0, %s51
      %s54 = ssub.s32 %s41, %s53
      %p55 = scmp.eq.s32.totalorder %s54, 0
      %s57 = sadd.s32 %s56, 1
      %s58 = scalar_select %p55, %s56, %s57
      %p61 = pneg %p55
      %p62 = scmp.eq.s32.totalorder %s34, 3
      %p63 = por %p61, %p62
      %p64 = scmp.ne.s32.totalorder %s56, %s59
      %p65 = scmp.eq.s32.totalorder %s34, 0
      %p66 = por %p64, %p65
      %p67 = scmp.ne.s32.totalorder %s56, %s59
      %p68 = scmp.eq.s32.totalorder %s39, 3
      %p69 = por %p67, %p68
      %p70 = scmp.ne.s32.totalorder %s59, %s60
      %p71 = scmp.eq.s32.totalorder %s39, 0
      %p72 = por %p70, %p71
      %p73 = scmp.ne.s32.totalorder %s59, %s60
      %p74 = scmp.eq.s32.totalorder %s40, 3
      %p75 = por %p73, %p74
      %p77 = scmp.ne.s32.totalorder %s60, %s76
      %p78 = scmp.eq.s32.totalorder %s40, 0
      %p79 = por %p77, %p78
      %s80 = ssub.s32 %s41, %s53
      %p81 = scmp.eq.s32.totalorder %s80, 0
      %s83 = sadd.s32 %s82, 1
      %s84 = scalar_select %p81, %s82, %s83
      %p87 = pneg %p81
      %p88 = scmp.eq.s32.totalorder %s34, 3
      %p89 = por %p87, %p88
      %p90 = scmp.ne.s32.totalorder %s82, %s85
      %p91 = scmp.eq.s32.totalorder %s34, 0
      %p92 = por %p90, %p91
      %p93 = scmp.ne.s32.totalorder %s82, %s85
      %p94 = scmp.eq.s32.totalorder %s39, 3
      %p95 = por %p93, %p94
      %p96 = scmp.ne.s32.totalorder %s85, %s86
      %p97 = scmp.eq.s32.totalorder %s39, 0
      %p98 = por %p96, %p97
      %p99 = scmp.ne.s32.totalorder %s85, %s86
      %p100 = scmp.eq.s32.totalorder %s40, 3
      %p101 = por %p99, %p100
      %p103 = scmp.ne.s32.totalorder %s86, %s102
      %p104 = scmp.eq.s32.totalorder %s40, 0
      %p105 = por %p103, %p104
      %s107 = sadd.s32 %s106, 1
      %p110 = scmp.eq.s32.totalorder %s34, 3
      %p111 = scmp.ne.s32.totalorder %s106, %s108
      %p112 = scmp.eq.s32.totalorder %s34, 0
      %p113 = por %p111, %p112
      %p114 = scmp.ne.s32.totalorder %s106, %s108
      %p115 = scmp.eq.s32.totalorder %s39, 3
      %p116 = por %p114, %p115
      %p117 = scmp.ne.s32.totalorder %s108, %s109
      %p118 = scmp.eq.s32.totalorder %s39, 0
      %p119 = por %p117, %p118
      %p120 = scmp.ne.s32.totalorder %s108, %s109
      %p121 = scmp.eq.s32.totalorder %s40, 3
      %p122 = por %p120, %p121
      %p124 = scmp.ne.s32.totalorder %s109, %s123
      %p125 = scmp.eq.s32.totalorder %s40, 0
      %p126 = por %p124, %p125
      %s128 = sadd.s32 %s127, 1
      %p131 = scmp.eq.s32.totalorder %s34, 3
      %p132 = scmp.ne.s32.totalorder %s127, %s129
      %p133 = scmp.eq.s32.totalorder %s34, 0
      %p134 = por %p132, %p133
      %p135 = scmp.ne.s32.totalorder %s127, %s129
      %p136 = scmp.eq.s32.totalorder %s39, 3
      %p137 = por %p135, %p136
      %p138 = scmp.ne.s32.totalorder %s129, %s130
      %p139 = scmp.eq.s32.totalorder %s39, 0
      %p140 = por %p138, %p139
      %p141 = scmp.ne.s32.totalorder %s129, %s130
      %p142 = scmp.eq.s32.totalorder %s40, 3
      %p143 = por %p141, %p142
      %p145 = scmp.ne.s32.totalorder %s130, %s144
      %p146 = scmp.eq.s32.totalorder %s40, 0
      %p147 = por %p145, %p146
      %s149 = sadd.s32 %s148, 1
      %p152 = scmp.eq.s32.totalorder %s34, 3
      %p153 = scmp.ne.s32.totalorder %s148, %s150
      %p154 = scmp.eq.s32.totalorder %s34, 0
      %p155 = por %p153, %p154
      %p156 = scmp.ne.s32.totalorder %s148, %s150
      %p157 = scmp.eq.s32.totalorder %s39, 3
      %p158 = por %p156, %p157
      %p159 = scmp.ne.s32.totalorder %s150, %s151
      %p160 = scmp.eq.s32.totalorder %s39, 0
      %p161 = por %p159, %p160
      %p162 = scmp.ne.s32.totalorder %s150, %s151
      %p163 = scmp.eq.s32.totalorder %s40, 3
      %p164 = por %p162, %p163
      %p166 = scmp.ne.s32.totalorder %s151, %s165
      %p167 = scmp.eq.s32.totalorder %s40, 0
      %p168 = por %p166, %p167
      %s170 = sadd.s32 %s169, 1
      %p173 = scmp.eq.s32.totalorder %s34, 3
      %p174 = scmp.ne.s32.totalorder %s169, %s171
      %p175 = scmp.eq.s32.totalorder %s34, 0
      %p176 = por %p174, %p175
      %p177 = scmp.ne.s32.totalorder %s169, %s171
      %p178 = scmp.eq.s32.totalorder %s39, 3
      %p179 = por %p177, %p178
      %p180 = scmp.ne.s32.totalorder %s171, %s172
      %p181 = scmp.eq.s32.totalorder %s39, 0
      %p182 = por %p180, %p181
      %p183 = scmp.ne.s32.totalorder %s171, %s172
      %p184 = scmp.eq.s32.totalorder %s40, 3
      %p185 = por %p183, %p184
      %p187 = scmp.ne.s32.totalorder %s172, %s186
      %p188 = scmp.eq.s32.totalorder %s40, 0
      %p189 = por %p187, %p188
      %s191 = sadd.s32 %s190, 1
      %p194 = scmp.eq.s32.totalorder %s34, 3
      %p195 = scmp.ne.s32.totalorder %s190, %s192
      %p196 = scmp.eq.s32.totalorder %s34, 0
      %p197 = por %p195, %p196
      %p198 = scmp.ne.s32.totalorder %s190, %s192
      %p199 = scmp.eq.s32.totalorder %s39, 3
      %p200 = por %p198, %p199
      %p201 = scmp.ne.s32.totalorder %s192, %s193
      %p202 = scmp.eq.s32.totalorder %s39, 0
      %p203 = por %p201, %p202
      %p204 = scmp.ne.s32.totalorder %s192, %s193
      %p205 = scmp.eq.s32.totalorder %s40, 3
      %p206 = por %p204, %p205
      %p208 = scmp.ne.s32.totalorder %s193, %s207
      %p209 = scmp.eq.s32.totalorder %s40, 0
      %p210 = por %p208, %p209
      %s212 = sadd.s32 %s211, 1
      %p215 = scmp.eq.s32.totalorder %s34, 3
      %p216 = scmp.ne.s32.totalorder %s211, %s213
      %p217 = scmp.eq.s32.totalorder %s34, 0
      %p218 = por %p216, %p217
      %p219 = scmp.ne.s32.totalorder %s211, %s213
      %p220 = scmp.eq.s32.totalorder %s39, 3
      %p221 = por %p219, %p220
      %p222 = scmp.ne.s32.totalorder %s213, %s214
      %p223 = scmp.eq.s32.totalorder %s39, 0
      %p224 = por %p222, %p223
      %p225 = scmp.ne.s32.totalorder %s213, %s214
      %p226 = scmp.eq.s32.totalorder %s40, 3
      %p227 = por %p225, %p226
      %p229 = scmp.ne.s32.totalorder %s214, %s228
      %p230 = scmp.eq.s32.totalorder %s40, 0
      %p231 = por %p229, %p230
      %s233 = sadd.s32 %s232, 1
      %p236 = scmp.eq.s32.totalorder %s34, 3
      %p237 = scmp.ne.s32.totalorder %s232, %s234
      %p238 = scmp.eq.s32.totalorder %s34, 0
      %p239 = por %p237, %p238
      %p240 = scmp.ne.s32.totalorder %s232, %s234
      %p241 = scmp.eq.s32.totalorder %s39, 3
      %p242 = por %p240, %p241
      %p243 = scmp.ne.s32.totalorder %s234, %s235
      %p244 = scmp.eq.s32.totalorder %s39, 0
      %p245 = por %p243, %p244
      %p246 = scmp.ne.s32.totalorder %s234, %s235
      %p247 = scmp.eq.s32.totalorder %s40, 3
      %p248 = por %p246, %p247
      %p250 = scmp.ne.s32.totalorder %s235, %s249
      %p251 = scmp.eq.s32.totalorder %s40, 0
      %p252 = por %p250, %p251
      %s254 = sadd.s32 %s253, 1
      %p257 = scmp.eq.s32.totalorder %s34, 3
      %p258 = scmp.ne.s32.totalorder %s253, %s255
      %p259 = scmp.eq.s32.totalorder %s34, 0
      %p260 = por %p258, %p259
      %p261 = scmp.ne.s32.totalorder %s253, %s255
      %p262 = scmp.eq.s32.totalorder %s39, 3
      %p263 = por %p261, %p262
      %p264 = scmp.ne.s32.totalorder %s255, %s256
      %p265 = scmp.eq.s32.totalorder %s39, 0
      %p266 = por %p264, %p265
      %p267 = scmp.ne.s32.totalorder %s255, %s256
      %p268 = scmp.eq.s32.totalorder %s40, 3
      %p269 = por %p267, %p268
      %p271 = scmp.ne.s32.totalorder %s256, %s270
      %p272 = scmp.eq.s32.totalorder %s40, 0
      %p273 = por %p271, %p272
      %s274 = ssub.s32 %s42, %s49
      %p275 = scmp.eq.s32.totalorder %s274, 0
      %s277 = sadd.s32 %s276, 1
      %s278 = scalar_select %p275, %s276, %s277
      %p281 = pneg %p275
      %p282 = scmp.eq.s32.totalorder %s34, 3
      %p283 = por %p281, %p282
      %p284 = scmp.ne.s32.totalorder %s276, %s279
      %p285 = scmp.eq.s32.totalorder %s34, 0
      %p286 = por %p284, %p285
      %p287 = scmp.ne.s32.totalorder %s276, %s279
      %p288 = scmp.eq.s32.totalorder %s39, 3
      %p289 = por %p287, %p288
      %p290 = scmp.ne.s32.totalorder %s279, %s280
      %p291 = scmp.eq.s32.totalorder %s39, 0
      %p292 = por %p290, %p291
      %p293 = scmp.ne.s32.totalorder %s279, %s280
      %p294 = scmp.eq.s32.totalorder %s40, 3
      %p295 = por %p293, %p294
      %p297 = scmp.ne.s32.totalorder %s280, %s296
      %p298 = scmp.eq.s32.totalorder %s40, 0
      %p299 = por %p297, %p298
      %s300 = ssub.s32 %s42, %s49
      %p301 = scmp.eq.s32.totalorder %s300, 0
      %s303 = sadd.s32 %s302, 1
      %s304 = scalar_select %p301, %s302, %s303
      %p307 = pneg %p301
      %p308 = scmp.eq.s32.totalorder %s34, 3
      %p309 = por %p307, %p308
      %p310 = scmp.ne.s32.totalorder %s302, %s305
      %p311 = scmp.eq.s32.totalorder %s34, 0
      %p312 = por %p310, %p311
      %p313 = scmp.ne.s32.totalorder %s302, %s305
      %p314 = scmp.eq.s32.totalorder %s39, 3
      %p315 = por %p313, %p314
      %p316 = scmp.ne.s32.totalorder %s305, %s306
      %p317 = scmp.eq.s32.totalorder %s39, 0
      %p318 = por %p316, %p317
      %p319 = scmp.ne.s32.totalorder %s305, %s306
      %p320 = scmp.eq.s32.totalorder %s40, 3
      %p321 = por %p319, %p320
      %p323 = scmp.ne.s32.totalorder %s306, %s322
      %p324 = scmp.eq.s32.totalorder %s40, 0
      %p325 = por %p323, %p324
      %s326 = ssub.s32 %s42, %s49
      %p327 = scmp.eq.s32.totalorder %s326, 0
      %s329 = sadd.s32 %s328, 1
      %s330 = scalar_select %p327, %s328, %s329
      %p333 = pneg %p327
      %p334 = scmp.eq.s32.totalorder %s34, 3
      %p335 = por %p333, %p334
      %p336 = scmp.ne.s32.totalorder %s328, %s331
      %p337 = scmp.eq.s32.totalorder %s34, 0
      %p338 = por %p336, %p337
      %p339 = scmp.ne.s32.totalorder %s328, %s331
      %p340 = scmp.eq.s32.totalorder %s39, 3
      %p341 = por %p339, %p340
      %p342 = scmp.ne.s32.totalorder %s331, %s332
      %p343 = scmp.eq.s32.totalorder %s39, 0
      %p344 = por %p342, %p343
      %p345 = scmp.ne.s32.totalorder %s331, %s332
      %p346 = scmp.eq.s32.totalorder %s40, 3
      %p347 = por %p345, %p346
      %p349 = scmp.ne.s32.totalorder %s332, %s348
      %p350 = scmp.eq.s32.totalorder %s40, 0
      %p351 = por %p349, %p350
      %s353 = sadd.s32 %s352, 1
      %p356 = scmp.eq.s32.totalorder %s34, 3
      %p357 = scmp.ne.s32.totalorder %s352, %s354
      %p358 = scmp.eq.s32.totalorder %s34, 0
      %p359 = por %p357, %p358
      %p360 = scmp.ne.s32.totalorder %s352, %s354
      %p361 = scmp.eq.s32.totalorder %s39, 3
      %p362 = por %p360, %p361
      %p363 = scmp.ne.s32.totalorder %s354, %s355
      %p364 = scmp.eq.s32.totalorder %s39, 0
      %p365 = por %p363, %p364
      %p366 = scmp.ne.s32.totalorder %s354, %s355
      %p367 = scmp.eq.s32.totalorder %s40, 3
      %p368 = por %p366, %p367
      %p370 = scmp.ne.s32.totalorder %s355, %s369
      %p371 = scmp.eq.s32.totalorder %s40, 0
      %p372 = por %p370, %p371
      %s374 = sadd.s32 %s373, 1
      %p377 = scmp.eq.s32.totalorder %s34, 3
      %p378 = scmp.ne.s32.totalorder %s373, %s375
      %p379 = scmp.eq.s32.totalorder %s34, 0
      %p380 = por %p378, %p379
      %p381 = scmp.ne.s32.totalorder %s373, %s375
      %p382 = scmp.eq.s32.totalorder %s39, 3
      %p383 = por %p381, %p382
      %p384 = scmp.ne.s32.totalorder %s375, %s376
      %p385 = scmp.eq.s32.totalorder %s39, 0
      %p386 = por %p384, %p385
      %p387 = scmp.ne.s32.totalorder %s375, %s376
      %p388 = scmp.eq.s32.totalorder %s40, 3
      %p389 = por %p387, %p388
      %p391 = scmp.ne.s32.totalorder %s376, %s390
      %p392 = scmp.eq.s32.totalorder %s40, 0
      %p393 = por %p391, %p392
      %s394 = ssub.s32 %s41, %s53
      %p395 = scmp.eq.s32.totalorder %s394, 0
      %s397 = sadd.s32 %s396, 1
      %s398 = scalar_select %p395, %s396, %s397
      %p401 = pneg %p395
      %p402 = scmp.eq.s32.totalorder %s34, 3
      %p403 = por %p401, %p402
      %p404 = scmp.ne.s32.totalorder %s396, %s399
      %p405 = scmp.eq.s32.totalorder %s34, 0
      %p406 = por %p404, %p405
      %p407 = scmp.ne.s32.totalorder %s396, %s399
      %p408 = scmp.eq.s32.totalorder %s39, 3
      %p409 = por %p407, %p408
      %p410 = scmp.ne.s32.totalorder %s399, %s400
      %p411 = scmp.eq.s32.totalorder %s39, 0
      %p412 = por %p410, %p411
      %p413 = scmp.ne.s32.totalorder %s399, %s400
      %p414 = scmp.eq.s32.totalorder %s40, 3
      %p415 = por %p413, %p414
      %p417 = scmp.ne.s32.totalorder %s400, %s416
      %p418 = scmp.eq.s32.totalorder %s40, 0
      %p419 = por %p417, %p418
      %p420 = scmp.le.s32.totalorder 1, %s34
      %p421 = scmp.lt.s32.totalorder %s34, 5
      %p422 = pnand %p420, %p421
      %p423 = pneg %p422
      // Predicated region
      $region9: #{tpu_custom_call.1} parent=5 // pred_check
        _
      $region10: #{tpu_custom_call.1} parent=5 // pred_check_branch
        %425 = sbr.rel (%p422) target = $region12
      $region11: #{tpu_custom_call.1} parent=5 // pred_region
        %s426 = ssub.s32 %s34, 1
        // Predicated region
        $region13: #{tpu_custom_call.1} parent=11 // pred_check
          %p427 = pneg %p119
        $region14: #{tpu_custom_call.1} parent=11 // pred_check_branch
          %429 = sbr.rel (%p427) target = $region16
        $region15: #{tpu_custom_call.1} parent=11 // pred_region
          %431 = vsyncadd [#allocation12], 0
          %s432 = sshll.u32 %s2, 4
          %s433 = int_to_ptr.hbm [resolvable:$true] %s432
          %s434 = sshll.u32 [#allocation13], 4
          %s435 = int_to_ptr.vmem [resolvable:$true] %s434
          %440 = dma.hbm_to_vmem [thread:$0]  %s433, 1024, %s435, [#allocation12], 64, 64, 4
        $region16: #{tpu_custom_call.1} parent=11 // pred_fallthru
          _
        // Predicated region
        $region17: #{tpu_custom_call.1} parent=11 // pred_check
          %p441 = pneg %p140
        $region18: #{tpu_custom_call.1} parent=11 // pred_check_branch
          %443 = sbr.rel (%p441) target = $region20
        $region19: #{tpu_custom_call.1} parent=11 // pred_region
          %445 = vsyncadd [#allocation15], 0
          %s447 = sshll.u32 %s3, 4
          %s448 = int_to_ptr.hbm [resolvable:$true] %s447
          %s449 = sshll.u32 [#allocation14], 4
          %s450 = int_to_ptr.vmem [resolvable:$true] %s449
          %452 = dma.hbm_to_vmem [thread:$0]  %s448, 16, %s450, [#allocation15]
        $region20: #{tpu_custom_call.1} parent=11 // pred_fallthru
          _
        // Predicated region
        $region21: #{tpu_custom_call.1} parent=11 // pred_check
          %p453 = pneg %p161
        $region22: #{tpu_custom_call.1} parent=11 // pred_check_branch
          %455 = sbr.rel (%p453) target = $region24
        $region23: #{tpu_custom_call.1} parent=11 // pred_region
          %457 = vsyncadd [#allocation15], 0
          %s458 = sshll.u32 %s4, 4
          %s459 = int_to_ptr.hbm [resolvable:$true] %s458
          %s460 = sshll.u32 [#allocation16], 4
          %s461 = int_to_ptr.vmem [resolvable:$true] %s460
          %466 = dma.hbm_to_vmem [thread:$0]  %s459, 512, %s461, [#allocation15], 64, 64, 4
        $region24: #{tpu_custom_call.1} parent=11 // pred_fallthru
          _
        // Predicated region
        $region25: #{tpu_custom_call.1} parent=11 // pred_check
          %p467 = pneg %p182
        $region26: #{tpu_custom_call.1} parent=11 // pred_check_branch
          %469 = sbr.rel (%p467) target = $region28
        $region27: #{tpu_custom_call.1} parent=11 // pred_region
          %471 = vsyncadd [#allocation18], 0
          %s473 = sshll.u32 %s5, 4
          %s474 = int_to_ptr.hbm [resolvable:$true] %s473
          %s475 = sshll.u32 [#allocation17], 4
          %s476 = int_to_ptr.vmem [resolvable:$true] %s475
          %478 = dma.hbm_to_vmem [thread:$0]  %s474, 16, %s476, [#allocation18]
        $region28: #{tpu_custom_call.1} parent=11 // pred_fallthru
          _
        // Predicated region
        $region29: #{tpu_custom_call.1} parent=11 // pred_check
          %p479 = pneg %p203
        $region30: #{tpu_custom_call.1} parent=11 // pred_check_branch
          %481 = sbr.rel (%p479) target = $region32
        $region31: #{tpu_custom_call.1} parent=11 // pred_region
          %483 = vsyncadd [#allocation18], 0
          %s484 = sshll.u32 %s6, 4
          %s485 = int_to_ptr.hbm [resolvable:$true] %s484
          %s486 = sshll.u32 [#allocation19], 4
          %s487 = int_to_ptr.vmem [resolvable:$true] %s486
          %492 = dma.hbm_to_vmem [thread:$0]  %s485, 512, %s487, [#allocation18], 64, 64, 4
        $region32: #{tpu_custom_call.1} parent=11 // pred_fallthru
          _
        // Predicated region
        $region33: #{tpu_custom_call.1} parent=11 // pred_check
          %p493 = pneg %p224
        $region34: #{tpu_custom_call.1} parent=11 // pred_check_branch
          %495 = sbr.rel (%p493) target = $region36
        $region35: #{tpu_custom_call.1} parent=11 // pred_region
          %497 = vsyncadd [#allocation21], 0
          %s499 = sshll.u32 %s7, 4
          %s500 = int_to_ptr.hbm [resolvable:$true] %s499
          %s501 = sshll.u32 [#allocation20], 4
          %s502 = int_to_ptr.vmem [resolvable:$true] %s501
          %504 = dma.hbm_to_vmem [thread:$0]  %s500, 16, %s502, [#allocation21]
        $region36: #{tpu_custom_call.1} parent=11 // pred_fallthru
          _
        // Predicated region
        $region37: #{tpu_custom_call.1} parent=11 // pred_check
          %p505 = pneg %p245
        $region38: #{tpu_custom_call.1} parent=11 // pred_check_branch
          %507 = sbr.rel (%p505) target = $region40
        $region39: #{tpu_custom_call.1} parent=11 // pred_region
          %509 = vsyncadd [#allocation21], 0
          %s510 = sshll.u32 %s8, 4
          %s511 = int_to_ptr.hbm [resolvable:$true] %s510
          %s512 = sshll.u32 [#allocation22], 4
          %s513 = int_to_ptr.vmem [resolvable:$true] %s512
          %518 = dma.hbm_to_vmem [thread:$0]  %s511, 1024, %s513, [#allocation21], 64, 64, 4
        $region40: #{tpu_custom_call.1} parent=11 // pred_fallthru
          _
        // Predicated region
        $region41: #{tpu_custom_call.1} parent=11 // pred_check
          %p519 = pneg %p266
        $region42: #{tpu_custom_call.1} parent=11 // pred_check_branch
          %521 = sbr.rel (%p519) target = $region44
        $region43: #{tpu_custom_call.1} parent=11 // pred_region
          %523 = vsyncadd [#allocation24], 0
          %s525 = sshll.u32 %s9, 4
          %s526 = int_to_ptr.hbm [resolvable:$true] %s525
          %s527 = sshll.u32 [#allocation23], 4
          %s528 = int_to_ptr.vmem [resolvable:$true] %s527
          %530 = dma.hbm_to_vmem [thread:$0]  %s526, 16, %s528, [#allocation24]
        $region44: #{tpu_custom_call.1} parent=11 // pred_fallthru
          _
        // Predicated region
        $region45: #{tpu_custom_call.1} parent=11 // pred_check
          %p531 = pneg %p365
        $region46: #{tpu_custom_call.1} parent=11 // pred_check_branch
          %533 = sbr.rel (%p531) target = $region48
        $region47: #{tpu_custom_call.1} parent=11 // pred_region
          _
        $region48: #{tpu_custom_call.1} parent=11 // pred_fallthru
          _
        // Predicated region
        $region49: #{tpu_custom_call.1} parent=11 // pred_check
          %p534 = pneg %p386
        $region50: #{tpu_custom_call.1} parent=11 // pred_check_branch
          %536 = sbr.rel (%p534) target = $region52
        $region51: #{tpu_custom_call.1} parent=11 // pred_region
          _
        $region52: #{tpu_custom_call.1} parent=11 // pred_fallthru
          _
      $region12: #{tpu_custom_call.1} parent=5 // pred_fallthru
        _
      %p537 = scmp.lt.s32.totalorder %s34, 4
      // Predicated region
      $region53: #{tpu_custom_call.1} parent=5 // pred_check
        %p538 = pneg %p537
      $region54: #{tpu_custom_call.1} parent=5 // pred_check_branch
        %540 = sbr.rel (%p538) target = $region56
      $region55: #{tpu_custom_call.1} parent=5 // pred_region
        // Predicated region
        $region57: #{tpu_custom_call.1} parent=55 // pred_check
          %p541 = pneg %p66
        $region58: #{tpu_custom_call.1} parent=55 // pred_check_branch
          %543 = sbr.rel (%p541) target = $region60
        $region59: #{tpu_custom_call.1} parent=55 // pred_region
          %s544 = sand.u32 %s34, 1
          %s545 = scalar_lea.sflag [#allocation9], %s544
          %s546 = sand.u32 %s56, 1
          %s547 = smul.addr %s546, 16
          %s548 = scalar_lea.vmem [#allocation8], %s547
          %s549 = smul.u32 2, %s41
          %551 = vsyncadd %s545, 0
          %s552 = smul.addr %s549, 8
          %s553 = scalar_lea.hbm %s0, %s552
          %s554 = sshll.u32 %s553, 4
          %s555 = int_to_ptr.hbm [resolvable:$true] %s554
          %s556 = sshll.u32 %s548, 4
          %s557 = int_to_ptr.vmem [resolvable:$true] %s556
          %562 = dma.hbm_to_vmem [thread:$0]  %s555, 256, %s557, %s545, 128, 128, 8
        $region60: #{tpu_custom_call.1} parent=55 // pred_fallthru
          _
        // Predicated region
        $region61: #{tpu_custom_call.1} parent=55 // pred_check
          %p563 = pneg %p92
        $region62: #{tpu_custom_call.1} parent=55 // pred_check_branch
          %565 = sbr.rel (%p563) target = $region64
        $region63: #{tpu_custom_call.1} parent=55 // pred_region
          %s566 = sand.u32 %s34, 1
          %s567 = scalar_lea.sflag [#allocation12], %s566
          %s568 = sand.u32 %s82, 1
          %s569 = smul.addr %s568, 32
          %s570 = scalar_lea.vmem [#allocation11], %s569
          %s571 = smul.u32 2, %s41
          %573 = vsyncadd %s567, 0
          %s574 = smul.addr %s571, 2
          %s575 = smul.addr %s574, 8
          %s576 = scalar_lea.hbm %s1, %s575
          %s577 = sshll.u32 %s576, 4
          %s578 = int_to_ptr.hbm [resolvable:$true] %s577
          %s579 = sshll.u32 %s570, 4
          %s580 = int_to_ptr.vmem [resolvable:$true] %s579
          %585 = dma.hbm_to_vmem [thread:$0]  %s578, 512, %s580, %s567, 128, 128, 8
        $region64: #{tpu_custom_call.1} parent=55 // pred_fallthru
          _
        // Predicated region
        $region65: #{tpu_custom_call.1} parent=55 // pred_check
          %p586 = pneg %p286
        $region66: #{tpu_custom_call.1} parent=55 // pred_check_branch
          %588 = sbr.rel (%p586) target = $region68
        $region67: #{tpu_custom_call.1} parent=55 // pred_region
          %s589 = sand.u32 %s34, 1
          %s590 = scalar_lea.sflag [#allocation9], %s589
          %s591 = sand.u32 %s276, 1
          %s592 = smul.addr %s591, 128
          %s593 = scalar_lea.vmem [#allocation25], %s592
          %s594 = smul.u32 2, %s42
          %596 = vsyncadd %s590, 0
          %s597 = smul.addr %s594, 4
          %s598 = scalar_lea.hbm %s10, %s597
          %s599 = sshll.u32 %s598, 4
          %s600 = int_to_ptr.hbm [resolvable:$true] %s599
          %s601 = sshll.u32 %s593, 4
          %s602 = int_to_ptr.vmem [resolvable:$true] %s601
          %607 = dma.hbm_to_vmem [thread:$0]  %s600, 2048, %s602, %s590, 256, 128, 8
        $region68: #{tpu_custom_call.1} parent=55 // pred_fallthru
          _
        // Predicated region
        $region69: #{tpu_custom_call.1} parent=55 // pred_check
          %p608 = pneg %p312
        $region70: #{tpu_custom_call.1} parent=55 // pred_check_branch
          %610 = sbr.rel (%p608) target = $region72
        $region71: #{tpu_custom_call.1} parent=55 // pred_region
          %s611 = smul.u32 2, %s42
          %p612 = scmp.lt.s32.totalorder %s611, 3
          %s613 = scalar_select %p612, %s611, 3
          %s614 = scalar_lea.vmem %s11, %s613
          %s615 = smul.u32 2, %s42
        $region72: #{tpu_custom_call.1} parent=55 // pred_fallthru
          _
        // Predicated region
        $region73: #{tpu_custom_call.1} parent=55 // pred_check
          %p616 = pneg %p338
        $region74: #{tpu_custom_call.1} parent=55 // pred_check_branch
          %618 = sbr.rel (%p616) target = $region76
        $region75: #{tpu_custom_call.1} parent=55 // pred_region
          %s619 = sand.u32 %s34, 1
          %s620 = scalar_lea.sflag [#allocation12], %s619
          %s621 = sand.u32 %s328, 1
          %s622 = smul.addr %s621, 128
          %s623 = scalar_lea.vmem [#allocation26], %s622
          %s624 = smul.u32 32, %s42
          %626 = vsyncadd %s620, 0
          %s627 = smul.addr %s624, 4
          %s628 = scalar_lea.hbm %s12, %s627
          %s629 = sshll.u32 %s628, 4
          %s630 = int_to_ptr.hbm [resolvable:$true] %s629
          %s631 = sshll.u32 %s623, 4
          %s632 = int_to_ptr.vmem [resolvable:$true] %s631
          %637 = dma.hbm_to_vmem [thread:$0]  %s630, 2048, %s632, %s620, 64, 64, 4
        $region76: #{tpu_custom_call.1} parent=55 // pred_fallthru
          _
      $region56: #{tpu_custom_call.1} parent=5 // pred_fallthru
        _
      %p638 = scmp.le.s32.totalorder 1, %s34
      %p639 = scmp.lt.s32.totalorder %s34, 5
      %p640 = pnand %p638, %p639
      %p641 = pneg %p640
      // Predicated region
      $region77: #{tpu_custom_call.1} parent=5 // pred_check
        _
      $region78: #{tpu_custom_call.1} parent=5 // pred_check_branch
        %643 = sbr.rel (%p640) target = $region80
      $region79: #{tpu_custom_call.1} parent=5 // pred_region
        %s644 = ssub.s32 %s34, 1
        %s645 = sand.u32 %s39, 1
        %s646 = scalar_lea.sflag [#allocation9], %s645
        %s647 = sand.u32 %s59, 1
        %s648 = smul.addr %s647, 16
        %s649 = scalar_lea.vmem [#allocation8], %s648
        // Predicated region
        $region81: #{tpu_custom_call.1} parent=79 // pred_check
          %p650 = pneg %p72
        $region82: #{tpu_custom_call.1} parent=79 // pred_check_branch
          %652 = sbr.rel (%p650) target = $region84
        $region83: #{tpu_custom_call.1} parent=79 // pred_region
          %654 = dma.done %s646, 256
        $region84: #{tpu_custom_call.1} parent=79 // pred_fallthru
          _
        %s655 = sand.u32 %s39, 1
        %s656 = scalar_lea.sflag [#allocation12], %s655
        %s657 = sand.u32 %s85, 1
        %s658 = smul.addr %s657, 32
        %s659 = scalar_lea.vmem [#allocation11], %s658
        // Predicated region
        $region85: #{tpu_custom_call.1} parent=79 // pred_check
          %p660 = pneg %p98
        $region86: #{tpu_custom_call.1} parent=79 // pred_check_branch
          %662 = sbr.rel (%p660) target = $region88
        $region87: #{tpu_custom_call.1} parent=79 // pred_region
          %664 = dma.done %s656, 512
        $region88: #{tpu_custom_call.1} parent=79 // pred_fallthru
          _
        // Predicated region
        $region89: #{tpu_custom_call.1} parent=79 // pred_check
          %p665 = pneg %p119
        $region90: #{tpu_custom_call.1} parent=79 // pred_check_branch
          %667 = sbr.rel (%p665) target = $region92
        $region91: #{tpu_custom_call.1} parent=79 // pred_region
          %669 = dma.done [#allocation12], 1024
        $region92: #{tpu_custom_call.1} parent=79 // pred_fallthru
          _
        // Predicated region
        $region93: #{tpu_custom_call.1} parent=79 // pred_check
          %p670 = pneg %p140
        $region94: #{tpu_custom_call.1} parent=79 // pred_check_branch
          %672 = sbr.rel (%p670) target = $region96
        $region95: #{tpu_custom_call.1} parent=79 // pred_region
          %674 = dma.done [#allocation15], 16
        $region96: #{tpu_custom_call.1} parent=79 // pred_fallthru
          _
        // Predicated region
        $region97: #{tpu_custom_call.1} parent=79 // pred_check
          %p675 = pneg %p161
        $region98: #{tpu_custom_call.1} parent=79 // pred_check_branch
          %677 = sbr.rel (%p675) target = $region100
        $region99: #{tpu_custom_call.1} parent=79 // pred_region
          %679 = dma.done [#allocation15], 512
        $region100: #{tpu_custom_call.1} parent=79 // pred_fallthru
          _
        // Predicated region
        $region101: #{tpu_custom_call.1} parent=79 // pred_check
          %p680 = pneg %p182
        $region102: #{tpu_custom_call.1} parent=79 // pred_check_branch
          %682 = sbr.rel (%p680) target = $region104
        $region103: #{tpu_custom_call.1} parent=79 // pred_region
          %684 = dma.done [#allocation18], 16
        $region104: #{tpu_custom_call.1} parent=79 // pred_fallthru
          _
        // Predicated region
        $region105: #{tpu_custom_call.1} parent=79 // pred_check
          %p685 = pneg %p203
        $region106: #{tpu_custom_call.1} parent=79 // pred_check_branch
          %687 = sbr.rel (%p685) target = $region108
        $region107: #{tpu_custom_call.1} parent=79 // pred_region
          %689 = dma.done [#allocation18], 512
        $region108: #{tpu_custom_call.1} parent=79 // pred_fallthru
          _
        // Predicated region
        $region109: #{tpu_custom_call.1} parent=79 // pred_check
          %p690 = pneg %p224
        $region110: #{tpu_custom_call.1} parent=79 // pred_check_branch
          %692 = sbr.rel (%p690) target = $region112
        $region111: #{tpu_custom_call.1} parent=79 // pred_region
          %694 = dma.done [#allocation21], 16
        $region112: #{tpu_custom_call.1} parent=79 // pred_fallthru
          _
        // Predicated region
        $region113: #{tpu_custom_call.1} parent=79 // pred_check
          %p695 = pneg %p245
        $region114: #{tpu_custom_call.1} parent=79 // pred_check_branch
          %697 = sbr.rel (%p695) target = $region116
        $region115: #{tpu_custom_call.1} parent=79 // pred_region
          %699 = dma.done [#allocation21], 1024
        $region116: #{tpu_custom_call.1} parent=79 // pred_fallthru
          _
        // Predicated region
        $region117: #{tpu_custom_call.1} parent=79 // pred_check
          %p700 = pneg %p266
        $region118: #{tpu_custom_call.1} parent=79 // pred_check_branch
          %702 = sbr.rel (%p700) target = $region120
        $region119: #{tpu_custom_call.1} parent=79 // pred_region
          %704 = dma.done [#allocation24], 16
        $region120: #{tpu_custom_call.1} parent=79 // pred_fallthru
          _
        %s705 = sand.u32 %s39, 1
        %s706 = scalar_lea.sflag [#allocation9], %s705
        %s707 = sand.u32 %s279, 1
        %s708 = smul.addr %s707, 128
        %s709 = scalar_lea.vmem [#allocation25], %s708
        // Predicated region
        $region121: #{tpu_custom_call.1} parent=79 // pred_check
          %p710 = pneg %p292
        $region122: #{tpu_custom_call.1} parent=79 // pred_check_branch
          %712 = sbr.rel (%p710) target = $region124
        $region123: #{tpu_custom_call.1} parent=79 // pred_region
          %714 = dma.done %s706, 2048
        $region124: #{tpu_custom_call.1} parent=79 // pred_fallthru
          _
        %s715 = sand.u32 %s39, 1
        %s716 = scalar_lea.sflag [#allocation12], %s715
        %s717 = sand.u32 %s331, 1
        %s718 = smul.addr %s717, 128
        %s719 = scalar_lea.vmem [#allocation26], %s718
        // Predicated region
        $region125: #{tpu_custom_call.1} parent=79 // pred_check
          %p720 = pneg %p344
        $region126: #{tpu_custom_call.1} parent=79 // pred_check_branch
          %722 = sbr.rel (%p720) target = $region128
        $region127: #{tpu_custom_call.1} parent=79 // pred_region
          %724 = dma.done %s716, 2048
        $region128: #{tpu_custom_call.1} parent=79 // pred_fallthru
          _
        %s725 = sand.u32 %s39, 1
        %s726 = scalar_lea.sflag [#allocation9], %s725
        %s727 = sand.u32 %s59, 1
        %s728 = smul.addr %s727, 16
        %s729 = scalar_lea.vmem [#allocation8], %s728
        %p730 = pneg %p72
        %p731 = pneg %p69
        %s732 = sand.u32 %s39, 1
        %s733 = scalar_lea.sflag [#allocation12], %s732
        %s734 = sand.u32 %s85, 1
        %s735 = smul.addr %s734, 32
        %s736 = scalar_lea.vmem [#allocation11], %s735
        %p737 = pneg %p98
        %p738 = pneg %p95
        %p739 = pneg %p119
        %p740 = pneg %p116
        %p741 = pneg %p140
        %p742 = pneg %p137
        %p743 = pneg %p161
        %p744 = pneg %p158
        %p745 = pneg %p182
        %p746 = pneg %p179
        %p747 = pneg %p203
        %p748 = pneg %p200
        %p749 = pneg %p224
        %p750 = pneg %p221
        %p751 = pneg %p245
        %p752 = pneg %p242
        %p753 = pneg %p266
        %p754 = pneg %p263
        %s755 = sand.u32 %s39, 1
        %s756 = scalar_lea.sflag [#allocation9], %s755
        %s757 = sand.u32 %s279, 1
        %s758 = smul.addr %s757, 128
        %s759 = scalar_lea.vmem [#allocation25], %s758
        %p760 = pneg %p292
        %p761 = pneg %p289
        %s762 = smul.u32 2, %s44
        %p763 = scmp.lt.s32.totalorder %s762, 3
        %s764 = scalar_select %p763, %s762, 3
        %s765 = scalar_lea.vmem %s11, %s764
        %p766 = pneg %p318
        %p767 = pneg %p315
        %s768 = sand.u32 %s39, 1
        %s769 = scalar_lea.sflag [#allocation12], %s768
        %s770 = sand.u32 %s331, 1
        %s771 = smul.addr %s770, 128
        %s772 = scalar_lea.vmem [#allocation26], %s771
        %p773 = pneg %p344
        %p774 = pneg %p341
        %p775 = pneg %p365
        %p776 = pneg %p362
        %p777 = pneg %p386
        %p778 = pneg %p383
        %p779 = pneg %p412
        %p780 = pneg %p409
        %s781 = sand.u32 %s399, 1
        %s782 = scalar_lea.sflag [#allocation10], %s781
        %s783 = sand.u32 %s399, 1
        %s784 = smul.addr %s783, 16
        %s785 = scalar_lea.vmem [#allocation27], %s784
        %s786 = smul.u32 2, %s43
        %s787 = smul.u32 2, %s43
        %s788 = smul.u32 2, %s44
        %s789 = smul.u32 2, %s44
        %p790 = scmp.lt.s32.totalorder %s789, 3
        %s791 = scalar_select %p790, %s789, 3
        %s792 = scalar_lea.vmem %s11, %s791
        %s793 = smul.u32 2, %s44
        %s794 = smul.u32 32, %s44
        %s795 = smul.u32 2, %s43
        %p797 = scmp.eq.s32.totalorder %s44, 0
        // Predicated region
        $region129: #{tpu_custom_call.1} parent=79 // pred_check
          %p798 = pneg %p797
        $region130: #{tpu_custom_call.1} parent=79 // pred_check_branch
          %800 = sbr.rel (%p798) target = $region132
        $region131: #{tpu_custom_call.1} parent=79 // pred_region
          %v801 = vld [vmem:[%s649] sm:$0xff]
          %v802 = vld [vmem:[%s649 + $0x8] sm:$0xff]
          %v803 = vld [vmem:[%s659] sm:$0xff]
          %v804 = vld [vmem:[%s659 + $0x8] sm:$0xff]
          %v805 = vld [vmem:[%s659 + $0x10] sm:$0xff]
          %v806 = vld [vmem:[%s659 + $0x18] sm:$0xff]
          %807 = vadd.xlane.f32.xlu0 %v801
          %v808 = vpop.xlane.xlu0 %807
          %809 = vadd.xlane.f32.xlu0 %v802
          %v810 = vpop.xlane.xlu0 %809
          %v811 = vrcp.pop 128.0
          %v812 = vmul.f32 128.0, %v811
          %v813 = vsub.f32 1.0, %v812
          %v814 = vmul.f32 %v811, %v813
          %v815 = vadd.f32 %v811, %v814
          %vm816 = vweird.f32 %v811
          %v817 = vsel %vm816, %v811, %v815
          %v818 = vmul.f32 %v808, %v817
          %v819 = vmul.f32 %v810, %v817
          %v820 = vsub.f32 %v801, %v818
          %v821 = vsub.f32 %v802, %v819
          %v822 = vmul.f32 %v820, %v820
          %v823 = vmul.f32 %v821, %v821
          %824 = vadd.xlane.f32.xlu0 %v822
          %v825 = vpop.xlane.xlu0 %824
          %826 = vadd.xlane.f32.xlu0 %v823
          %v827 = vpop.xlane.xlu0 %826
          %v828 = vmul.f32 %v825, %v817
          %v829 = vmul.f32 %v827, %v817
          %v830 = vadd.f32 %v828, 1e-05
          %v831 = vadd.f32 %v829, 1e-05
          %v832 = vrsqrt.pop %v830
          %v833 = vmul.f32 %v832, %v830
          %v834 = vmul.f32 %v833, %v832
          %v835 = vmul.f32 0.5, %v834
          %v836 = vsub.f32 1.5, %v835
          %v837 = vmul.f32 %v832, %v836
          %vm838 = vweird.f32 %v830
          %vm839 = vweird.f32 %v832
          %vm840 = vmor %vm838, %vm839
          %v841 = vsel %vm840, %v832, %v837
          %v842 = vrsqrt.pop %v831
          %v843 = vmul.f32 %v842, %v831
          %v844 = vmul.f32 %v843, %v842
          %v845 = vmul.f32 0.5, %v844
          %v846 = vsub.f32 1.5, %v845
          %v847 = vmul.f32 %v842, %v846
          %vm848 = vweird.f32 %v831
          %vm849 = vweird.f32 %v842
          %vm850 = vmor %vm848, %vm849
          %v851 = vsel %vm850, %v842, %v847
          %v852 = vmul.f32 %v820, %v841
          %v853 = vmul.f32 %v821, %v851
          %vm854 = vcmask 523264
          %v855 = vsel %vm854, %v803, 0.0
          %856 = vadd.xlane.f32.xlu0 %v855
          %v857 = vpop.xlane.xlu0 %856
          %v858 = vsel %vm854, %v804, 0.0
          %859 = vadd.xlane.f32.xlu0 %v858
          %v860 = vpop.xlane.xlu0 %859
          %v861 = vsel %vm854, %v805, 0.0
          %862 = vadd.xlane.f32.xlu0 %v861
          %v863 = vpop.xlane.xlu0 %862
          %v864 = vsel %vm854, %v806, 0.0
          %865 = vadd.xlane.f32.xlu0 %v864
          %v866 = vpop.xlane.xlu0 %865
          %v867 = vrcp.pop 64.0
          %v868 = vmul.f32 64.0, %v867
          %v869 = vsub.f32 1.0, %v868
          %v870 = vmul.f32 %v867, %v869
          %v871 = vadd.f32 %v867, %v870
          %vm872 = vweird.f32 %v867
          %v873 = vsel %vm872, %v867, %v871
          %v874 = vmul.f32 %v857, %v873
          %v875 = vmul.f32 %v860, %v873
          %v876 = vmul.f32 %v863, %v873
          %v877 = vmul.f32 %v866, %v873
          %v878 = vsub.f32 %v803, %v874
          %v879 = vsub.f32 %v804, %v875
          %v880 = vsub.f32 %v805, %v876
          %v881 = vsub.f32 %v806, %v877
          %v882 = vmul.f32 %v878, %v878
          %v883 = vmul.f32 %v879, %v879
          %v884 = vmul.f32 %v880, %v880
          %v885 = vmul.f32 %v881, %v881
          %v886 = vsel %vm854, %v882, 0.0
          %887 = vadd.xlane.f32.xlu0 %v886
          %v888 = vpop.xlane.xlu0 %887
          %v889 = vsel %vm854, %v883, 0.0
          %890 = vadd.xlane.f32.xlu0 %v889
          %v891 = vpop.xlane.xlu0 %890
          %v892 = vsel %vm854, %v884, 0.0
          %893 = vadd.xlane.f32.xlu0 %v892
          %v894 = vpop.xlane.xlu0 %893
          %v895 = vsel %vm854, %v885, 0.0
          %896 = vadd.xlane.f32.xlu0 %v895
          %v897 = vpop.xlane.xlu0 %896
          %v898 = vmul.f32 %v888, %v873
          %v899 = vmul.f32 %v891, %v873
          %v900 = vmul.f32 %v894, %v873
          %v901 = vmul.f32 %v897, %v873
          %v902 = vadd.f32 %v898, 1e-05
          %v903 = vadd.f32 %v899, 1e-05
          %v904 = vadd.f32 %v900, 1e-05
          %v905 = vadd.f32 %v901, 1e-05
          %v906 = vrsqrt.pop %v902
          %v907 = vmul.f32 %v906, %v902
          %v908 = vmul.f32 %v907, %v906
          %v909 = vmul.f32 0.5, %v908
          %v910 = vsub.f32 1.5, %v909
          %v911 = vmul.f32 %v906, %v910
          %vm912 = vweird.f32 %v902
          %vm913 = vweird.f32 %v906
          %vm914 = vmor %vm912, %vm913
          %v915 = vsel %vm914, %v906, %v911
          %v916 = vrsqrt.pop %v903
          %v917 = vmul.f32 %v916, %v903
          %v918 = vmul.f32 %v917, %v916
          %v919 = vmul.f32 0.5, %v918
          %v920 = vsub.f32 1.5, %v919
          %v921 = vmul.f32 %v916, %v920
          %vm922 = vweird.f32 %v903
          %vm923 = vweird.f32 %v916
          %vm924 = vmor %vm922, %vm923
          %v925 = vsel %vm924, %v916, %v921
          %v926 = vrsqrt.pop %v904
          %v927 = vmul.f32 %v926, %v904
          %v928 = vmul.f32 %v927, %v926
          %v929 = vmul.f32 0.5, %v928
          %v930 = vsub.f32 1.5, %v929
          %v931 = vmul.f32 %v926, %v930
          %vm932 = vweird.f32 %v904
          %vm933 = vweird.f32 %v926
          %vm934 = vmor %vm932, %vm933
          %v935 = vsel %vm934, %v926, %v931
          %v936 = vrsqrt.pop %v905
          %v937 = vmul.f32 %v936, %v905
          %v938 = vmul.f32 %v937, %v936
          %v939 = vmul.f32 0.5, %v938
          %v940 = vsub.f32 1.5, %v939
          %v941 = vmul.f32 %v936, %v940
          %vm942 = vweird.f32 %v905
          %vm943 = vweird.f32 %v936
          %vm944 = vmor %vm942, %vm943
          %v945 = vsel %vm944, %v936, %v941
          %v946 = vmul.f32 %v878, %v915
          %v947 = vmul.f32 %v879, %v925
          %v948 = vmul.f32 %v880, %v935
          %v949 = vmul.f32 %v881, %v945
          %v950 = vld [vmem:[#allocation13] sm:$0xf]
          %v951 = vld [vmem:[#allocation13 + $0x4] sm:$0xf]
          %v952 = vld [vmem:[#allocation13 + $0x8] sm:$0xf]
          %v953 = vld [vmem:[#allocation13 + $0xc] sm:$0xf]
          %v954 = vld [vmem:[#allocation13 + $0x10] sm:$0xf]
          %v955 = vld [vmem:[#allocation13 + $0x14] sm:$0xf]
          %v956 = vld [vmem:[#allocation13 + $0x18] sm:$0xf]
          %v957 = vld [vmem:[#allocation13 + $0x1c] sm:$0xf]
          %v958 = vld [vmem:[#allocation13 + $0x20] sm:$0xf]
          %v959 = vld [vmem:[#allocation13 + $0x24] sm:$0xf]
          %v960 = vld [vmem:[#allocation13 + $0x28] sm:$0xf]
          %v961 = vld [vmem:[#allocation13 + $0x2c] sm:$0xf]
          %v962 = vld [vmem:[#allocation13 + $0x30] sm:$0xf]
          %v963 = vld [vmem:[#allocation13 + $0x34] sm:$0xf]
          %v964 = vld [vmem:[#allocation13 + $0x38] sm:$0xf]
          %v965 = vld [vmem:[#allocation13 + $0x3c] sm:$0xf]
          %v966 = vpack.c.bf16 %v853, %v852
          %v967 = vld [vmem:[#allocation14] sm:$0x1]
          %v969 = vperm.slane %v967, 0
          %v987 = vunpack.c.l.b16 %v950
          %v988 = vunpack.c.l.b16 %v951
          %v989 = vunpack.c.l.b16 %v952
          %v990 = vunpack.c.l.b16 %v953
          %v991 = vunpack.c.l.b16 %v954
          %v992 = vunpack.c.l.b16 %v955
          %v993 = vunpack.c.l.b16 %v956
          %v994 = vunpack.c.l.b16 %v957
          %v995 = vunpack.c.l.b16 %v958
          %v996 = vunpack.c.l.b16 %v959
          %v997 = vunpack.c.l.b16 %v960
          %v998 = vunpack.c.l.b16 %v961
          %v999 = vunpack.c.l.b16 %v962
          %v1000 = vunpack.c.l.b16 %v963
          %v1001 = vunpack.c.l.b16 %v964
          %v1002 = vunpack.c.l.b16 %v965
          %v1003 = vpack.c.b16 %v988, %v987
          %v1004 = vpack.c.b16 %v990, %v989
          %v1005 = vpack.c.b16 %v992, %v991
          %v1006 = vpack.c.b16 %v994, %v993
          %v1007 = vpack.c.b16 %v996, %v995
          %v1008 = vpack.c.b16 %v998, %v997
          %v1009 = vpack.c.b16 %v1000, %v999
          %v1010 = vpack.c.b16 %v1002, %v1001
          %1019 = vmatpush.bf16.msra.mxu0 %v1010
          %1020 = vmatpush.bf16.msra.mxu0 %v1009
          %1021 = vmatpush.bf16.msra.mxu0 %v1008
          %1022 = vmatpush.bf16.msra.mxu0 %v1007
          %1023 = vmatpush.bf16.msra.mxu0 %v1006
          %1024 = vmatpush.bf16.msra.mxu0 %v1005
          %1025 = vmatpush.bf16.msra.mxu0 %v1004
          %1026 = vmatpush.bf16.msra.mxu0 %v1003
          %1027 = vmatmul.bf16.gmra.mxu0 %v966
          %v1028 = vpop.f32.mrf.mxu0
          %v1029 = vadd.f32 %v969, %v1028
          %v1030 = vpop.f32.mrf.mxu0
          %v1031 = vadd.f32 %v969, %v1030
          %1032 = vdwg.mxu0
          %1033 = vst [vmem:[#allocation2] sm:$0xff] %v1029
          %1034 = vst [vmem:[#allocation2 + $0x8] sm:$0xff] %v1031
          %v1035 = vld [vmem:[#allocation16] sm:$0xf]
          %v1036 = vld [vmem:[#allocation16 + $0x4] sm:$0xf]
          %v1037 = vld [vmem:[#allocation16 + $0x8] sm:$0xf]
          %v1038 = vld [vmem:[#allocation16 + $0xc] sm:$0xf]
          %v1039 = vld [vmem:[#allocation16 + $0x10] sm:$0xf]
          %v1040 = vld [vmem:[#allocation16 + $0x14] sm:$0xf]
          %v1041 = vld [vmem:[#allocation16 + $0x18] sm:$0xf]
          %v1042 = vld [vmem:[#allocation16 + $0x1c] sm:$0xf]
          %v1043 = vpack.c.bf16 %v947, %v946
          %v1044 = vpack.c.bf16 %v949, %v948
          %v1045 = vld [vmem:[#allocation17] sm:$0x1]
          %v1047 = vperm.slane %v1045, 0
          %v1057 = vunpack.c.l.b16 %v1035
          %v1058 = vunpack.c.l.b16 %v1036
          %v1059 = vunpack.c.l.b16 %v1037
          %v1060 = vunpack.c.l.b16 %v1038
          %v1061 = vunpack.c.l.b16 %v1039
          %v1062 = vunpack.c.l.b16 %v1040
          %v1063 = vunpack.c.l.b16 %v1041
          %v1064 = vunpack.c.l.b16 %v1042
          %v1065 = vpack.c.b16 %v1058, %v1057
          %v1066 = vpack.c.b16 %v1060, %v1059
          %v1067 = vpack.c.b16 %v1062, %v1061
          %v1068 = vpack.c.b16 %v1064, %v1063
          %v1074 = vsel %vm854, %v1043, 0
          %v1077 = vsel %vm854, %v1044, 0
          %1079 = vmatpush.bf16.msra.mxu0 0
          %1080 = vmatpush.bf16.msra.mxu0 0
          %1081 = vmatpush.bf16.msra.mxu0 0
          %1082 = vmatpush.bf16.msra.mxu0 0
          %1083 = vmatpush.bf16.msra.mxu0 %v1068
          %1084 = vmatpush.bf16.msra.mxu0 %v1067
          %1085 = vmatpush.bf16.msra.mxu0 %v1066
          %1086 = vmatpush.bf16.msra.mxu0 %v1065
          %1087 = vmatmul.bf16.gmra.mxu0 %v1074
          %v1088 = vpop.f32.mrf.mxu0
          %v1089 = vadd.f32 %v1047, %v1088
          %v1090 = vpop.f32.mrf.mxu0
          %v1091 = vadd.f32 %v1047, %v1090
          %1092 = vmatmul.bf16.gmra.mxu0 %v1077
          %v1093 = vpop.f32.mrf.mxu0
          %v1094 = vadd.f32 %v1047, %v1093
          %v1095 = vpop.f32.mrf.mxu0
          %v1096 = vadd.f32 %v1047, %v1095
          %1097 = vdwg.mxu0
          %1098 = vst [vmem:[#allocation3] sm:$0xff] %v1089
          %1099 = vst [vmem:[#allocation3 + $0x8] sm:$0xff] %v1091
          %1100 = vst [vmem:[#allocation3 + $0x10] sm:$0xff] %v1094
          %1101 = vst [vmem:[#allocation3 + $0x18] sm:$0xff] %v1096
          %v1102 = vld [vmem:[#allocation19] sm:$0xf]
          %v1103 = vld [vmem:[#allocation19 + $0x4] sm:$0xf]
          %v1104 = vld [vmem:[#allocation19 + $0x8] sm:$0xf]
          %v1105 = vld [vmem:[#allocation19 + $0xc] sm:$0xf]
          %v1106 = vld [vmem:[#allocation19 + $0x10] sm:$0xf]
          %v1107 = vld [vmem:[#allocation19 + $0x14] sm:$0xf]
          %v1108 = vld [vmem:[#allocation19 + $0x18] sm:$0xf]
          %v1109 = vld [vmem:[#allocation19 + $0x1c] sm:$0xf]
          %v1110 = vld [vmem:[#allocation20] sm:$0x1]
          %v1112 = vperm.slane %v1110, 0
          %v1122 = vunpack.c.l.b16 %v1102
          %v1123 = vunpack.c.l.b16 %v1103
          %v1124 = vunpack.c.l.b16 %v1104
          %v1125 = vunpack.c.l.b16 %v1105
          %v1126 = vunpack.c.l.b16 %v1106
          %v1127 = vunpack.c.l.b16 %v1107
          %v1128 = vunpack.c.l.b16 %v1108
          %v1129 = vunpack.c.l.b16 %v1109
          %v1130 = vpack.c.b16 %v1123, %v1122
          %v1131 = vpack.c.b16 %v1125, %v1124
          %v1132 = vpack.c.b16 %v1127, %v1126
          %v1133 = vpack.c.b16 %v1129, %v1128
          %1138 = vmatpush.bf16.msra.mxu0 0
          %1139 = vmatpush.bf16.msra.mxu0 0
          %1140 = vmatpush.bf16.msra.mxu0 0
          %1141 = vmatpush.bf16.msra.mxu0 0
          %1142 = vmatpush.bf16.msra.mxu0 %v1133
          %1143 = vmatpush.bf16.msra.mxu0 %v1132
          %1144 = vmatpush.bf16.msra.mxu0 %v1131
          %1145 = vmatpush.bf16.msra.mxu0 %v1130
          %1146 = vmatmul.bf16.gmra.mxu0 %v1074
          %v1147 = vpop.f32.mrf.mxu0
          %v1148 = vadd.f32 %v1112, %v1147
          %v1149 = vpop.f32.mrf.mxu0
          %v1150 = vadd.f32 %v1112, %v1149
          %1151 = vmatmul.bf16.gmra.mxu0 %v1077
          %v1152 = vpop.f32.mrf.mxu0
          %v1153 = vadd.f32 %v1112, %v1152
          %v1154 = vpop.f32.mrf.mxu0
          %v1155 = vadd.f32 %v1112, %v1154
          %1156 = vdwg.mxu0
          %1157 = vst [vmem:[#allocation4] sm:$0xff] %v1148
          %1158 = vst [vmem:[#allocation4 + $0x8] sm:$0xff] %v1150
          %1159 = vst [vmem:[#allocation4 + $0x10] sm:$0xff] %v1153
          %1160 = vst [vmem:[#allocation4 + $0x18] sm:$0xff] %v1155
          %v1161 = vld [vmem:[%s14] sm:$0x1]
          %v1162 = vld [vmem:[%s14 + $0x1] sm:$0x1]
          %v1163 = vld [vmem:[%s14 + $0x2] sm:$0x1]
          %v1164 = vld [vmem:[%s14 + $0x3] sm:$0x1]
          loop: start=0, step=1, limit=2
          $region133: #{tpu_custom_call.1} parent=131 // loop_pre_header
            _
          $region134: #{tpu_custom_call.1} parent=131 // loop_header
            %s1166 = sphi 0, %s1170
            %p1167 = scmp.ge.s32.totalorder %s1166, 2
          $region135: #{tpu_custom_call.1} parent=131 // loop_header_branch
            %1169 = sbr.rel (%p1167) target = $region139
          $region136: #{tpu_custom_call.1} parent=131 // loop_body
            %s1171 = smul.u32 %s1166, 8
            %s1172 = smul.u32 %s1166, 16
            %s1173 = scalar_lea.vmem [#allocation2], %s1171
            %v1174 = vld [vmem:[%s1173] sm:$0xff]
            %s1175 = scalar_lea.vmem [#allocation3], %s1172
            %v1176 = vld [vmem:[%s1175] sm:$0xff]
            %v1177 = vld [vmem:[%s1175 + $0x8] sm:$0xff]
            %s1178 = scalar_lea.vmem [#allocation4], %s1172
            %v1179 = vld [vmem:[%s1178] sm:$0xff]
            %v1180 = vld [vmem:[%s1178 + $0x8] sm:$0xff]
            %v1185 = vperm.slane %v1161, 0
            %v1186 = vperm.slane %v1162, 0
            %v1187 = vperm.slane %v1163, 0
            %v1188 = vperm.slane %v1164, 0
            %v1193 = vmul.f32 %v1185, %v1174
            %v1194 = vmul.f32 %v1186, %v1174
            %v1195 = vmul.f32 %v1187, %v1174
            %v1196 = vmul.f32 %v1188, %v1174
            %v1197 = vpack.c.bf16 %v1194, %v1193
            %v1198 = vpack.c.bf16 %v1196, %v1195
            %v1199 = vpack.c.bf16 %v1177, %v1176
            %1200 = vmatpush.bf16.xpose.msra.mxu0 0
            %1201 = vmatpush.bf16.xpose.msra.mxu0 0
            %1202 = vmatpush.bf16.xpose.msra.mxu0 0
            %1203 = vmatpush.bf16.xpose.msra.mxu0 0
            %1204 = vmatpush.bf16.xpose.msra.mxu0 0
            %1205 = vmatpush.bf16.xpose.msra.mxu0 0
            %1206 = vmatpush.bf16.xpose.msra.mxu0 0
            %1207 = vmatpush.bf16.xpose.msra.mxu0 %v1199
            %1208 = vmatmul.bf16.gmra.mxu0 %v1197
            %v1209 = vpop.f32.mrf.mxu0
            %v1210 = vadd.f32 0.0, %v1209
            %v1211 = vpop.f32.mrf.mxu0
            %v1212 = vadd.f32 0.0, %v1211
            %1213 = vmatmul.bf16.gmra.mxu0 %v1198
            %v1214 = vpop.f32.mrf.mxu0
            %v1215 = vadd.f32 0.0, %v1214
            %v1216 = vpop.f32.mrf.mxu0
            %v1217 = vadd.f32 0.0, %v1216
            %1218 = vdwg.mxu0
            %vm1219 = vcmask 130048
            %v1220 = vsel %vm1219, %v1210, -inf
            %1221 = vmax.xlane.f32.xlu0 %v1220
            %v1222 = vpop.xlane.xlu0 %1221
            %v1223 = vsel %vm1219, %v1212, -inf
            %1224 = vmax.xlane.f32.xlu0 %v1223
            %v1225 = vpop.xlane.xlu0 %1224
            %v1226 = vsel %vm1219, %v1215, -inf
            %1227 = vmax.xlane.f32.xlu0 %v1226
            %v1228 = vpop.xlane.xlu0 %1227
            %v1229 = vsel %vm1219, %v1217, -inf
            %1230 = vmax.xlane.f32.xlu0 %v1229
            %v1231 = vpop.xlane.xlu0 %1230
            %v1232 = vsub.f32 %v1210, %v1222
            %v1233 = vsub.f32 %v1212, %v1225
            %v1234 = vsub.f32 %v1215, %v1228
            %v1235 = vsub.f32 %v1217, %v1231
            %v1236 = vmul.f32 %v1232, 1.442695
            %v1237 = vpow.pop %v1236
            %v1238 = vmul.f32 %v1233, 1.442695
            %v1239 = vpow.pop %v1238
            %v1240 = vmul.f32 %v1234, 1.442695
            %v1241 = vpow.pop %v1240
            %v1242 = vmul.f32 %v1235, 1.442695
            %v1243 = vpow.pop %v1242
            %v1244 = vsel %vm1219, %v1237, 0.0
            %1245 = vadd.xlane.f32.xlu0 %v1244
            %v1246 = vpop.xlane.xlu0 %1245
            %v1247 = vsel %vm1219, %v1239, 0.0
            %1248 = vadd.xlane.f32.xlu0 %v1247
            %v1249 = vpop.xlane.xlu0 %1248
            %v1250 = vsel %vm1219, %v1241, 0.0
            %1251 = vadd.xlane.f32.xlu0 %v1250
            %v1252 = vpop.xlane.xlu0 %1251
            %v1253 = vsel %vm1219, %v1243, 0.0
            %1254 = vadd.xlane.f32.xlu0 %v1253
            %v1255 = vpop.xlane.xlu0 %1254
            %v1256 = vrcp.pop %v1246
            %v1257 = vrcp.pop %v1249
            %v1258 = vrcp.pop %v1252
            %v1259 = vrcp.pop %v1255
            %v1260 = vmul.f32 %v1237, %v1256
            %v1261 = vmul.f32 %v1239, %v1257
            %v1262 = vmul.f32 %v1241, %v1258
            %v1263 = vmul.f32 %v1243, %v1259
            %v1264 = vpack.c.bf16 %v1261, %v1260
            %v1265 = vpack.c.bf16 %v1263, %v1262
            %v1266 = vpack.c.bf16 %v1180, %v1179
            %v1268 = vsel %vm1219, %v1264, 0
            %v1271 = vsel %vm1219, %v1265, 0
            %1273 = vmatpush.bf16.msra.mxu0 0
            %1274 = vmatpush.bf16.msra.mxu0 0
            %1275 = vmatpush.bf16.msra.mxu0 0
            %1276 = vmatpush.bf16.msra.mxu0 0
            %1277 = vmatpush.bf16.msra.mxu0 0
            %1278 = vmatpush.bf16.msra.mxu0 0
            %1279 = vmatpush.bf16.msra.mxu0 0
            %1280 = vmatpush.bf16.msra.mxu0 %v1266
            %1281 = vmatmul.bf16.gmra.mxu0 %v1268
            %v1282 = vpop.f32.mrf.mxu0
            %v1283 = vadd.f32 0.0, %v1282
            %v1284 = vpop.f32.mrf.mxu0
            %v1285 = vadd.f32 0.0, %v1284
            %1286 = vmatmul.bf16.gmra.mxu0 %v1271
            %v1287 = vpop.f32.mrf.mxu0
            %v1288 = vadd.f32 0.0, %v1287
            %v1289 = vpop.f32.mrf.mxu0
            %v1290 = vadd.f32 0.0, %v1289
            %1291 = vdwg.mxu0
            %v1292 = vmul.f32 %v1283, %v1185
            %v1293 = vmul.f32 %v1285, %v1186
            %v1294 = vmul.f32 %v1288, %v1187
            %v1295 = vmul.f32 %v1290, %v1188
            %v1296 = vadd.f32 %v1292, %v1293
            %v1297 = vadd.f32 %v1296, %v1294
            %v1298 = vadd.f32 %v1297, %v1295
            %s1299 = scalar_lea.vmem [#allocation7], %s1171
            %1300 = vst [vmem:[%s1299] sm:$0xff] %v1298
          $region137: #{tpu_custom_call.1} parent=131 // loop_footer
            %s1170 = sadd.s32 1, %s1166
          $region138: #{tpu_custom_call.1} parent=131 // loop_footer_branch
            %1165 = sbr.rel target = $region134
          $region139: #{tpu_custom_call.1} parent=131 // loop_exit
            _
          %v1301 = vld [vmem:[#allocation7] sm:$0xff]
          %v1302 = vld [vmem:[#allocation7 + $0x8] sm:$0xff]
          %v1303 = vld [vmem:[#allocation22] sm:$0xf]
          %v1304 = vld [vmem:[#allocation22 + $0x4] sm:$0xf]
          %v1305 = vld [vmem:[#allocation22 + $0x8] sm:$0xf]
          %v1306 = vld [vmem:[#allocation22 + $0xc] sm:$0xf]
          %v1307 = vld [vmem:[#allocation22 + $0x10] sm:$0xf]
          %v1308 = vld [vmem:[#allocation22 + $0x14] sm:$0xf]
          %v1309 = vld [vmem:[#allocation22 + $0x18] sm:$0xf]
          %v1310 = vld [vmem:[#allocation22 + $0x1c] sm:$0xf]
          %v1311 = vld [vmem:[#allocation22 + $0x20] sm:$0xf]
          %v1312 = vld [vmem:[#allocation22 + $0x24] sm:$0xf]
          %v1313 = vld [vmem:[#allocation22 + $0x28] sm:$0xf]
          %v1314 = vld [vmem:[#allocation22 + $0x2c] sm:$0xf]
          %v1315 = vld [vmem:[#allocation22 + $0x30] sm:$0xf]
          %v1316 = vld [vmem:[#allocation22 + $0x34] sm:$0xf]
          %v1317 = vld [vmem:[#allocation22 + $0x38] sm:$0xf]
          %v1318 = vld [vmem:[#allocation22 + $0x3c] sm:$0xf]
          %v1319 = vpack.c.bf16 %v1302, %v1301
          %v1320 = vld [vmem:[#allocation23] sm:$0x1]
          %v1322 = vperm.slane %v1320, 0
          %v1340 = vunpack.c.l.b16 %v1303
          %v1341 = vunpack.c.l.b16 %v1304
          %v1342 = vunpack.c.l.b16 %v1305
          %v1343 = vunpack.c.l.b16 %v1306
          %v1344 = vunpack.c.l.b16 %v1307
          %v1345 = vunpack.c.l.b16 %v1308
          %v1346 = vunpack.c.l.b16 %v1309
          %v1347 = vunpack.c.l.b16 %v1310
          %v1348 = vunpack.c.l.b16 %v1311
          %v1349 = vunpack.c.l.b16 %v1312
          %v1350 = vunpack.c.l.b16 %v1313
          %v1351 = vunpack.c.l.b16 %v1314
          %v1352 = vunpack.c.l.b16 %v1315
          %v1353 = vunpack.c.l.b16 %v1316
          %v1354 = vunpack.c.l.b16 %v1317
          %v1355 = vunpack.c.l.b16 %v1318
          %v1356 = vpack.c.b16 %v1341, %v1340
          %v1357 = vpack.c.b16 %v1343, %v1342
          %v1358 = vpack.c.b16 %v1345, %v1344
          %v1359 = vpack.c.b16 %v1347, %v1346
          %v1360 = vpack.c.b16 %v1349, %v1348
          %v1361 = vpack.c.b16 %v1351, %v1350
          %v1362 = vpack.c.b16 %v1353, %v1352
          %v1363 = vpack.c.b16 %v1355, %v1354
          %1372 = vmatpush.bf16.msra.mxu0 %v1363
          %1373 = vmatpush.bf16.msra.mxu0 %v1362
          %1374 = vmatpush.bf16.msra.mxu0 %v1361
          %1375 = vmatpush.bf16.msra.mxu0 %v1360
          %1376 = vmatpush.bf16.msra.mxu0 %v1359
          %1377 = vmatpush.bf16.msra.mxu0 %v1358
          %1378 = vmatpush.bf16.msra.mxu0 %v1357
          %1379 = vmatpush.bf16.msra.mxu0 %v1356
          %1380 = vmatmul.bf16.gmra.mxu0 %v1319
          %v1381 = vpop.f32.mrf.mxu0
          %v1382 = vadd.f32 %v1322, %v1381
          %v1383 = vpop.f32.mrf.mxu0
          %v1384 = vadd.f32 %v1322, %v1383
          %1385 = vdwg.mxu0
          %v1386 = vadd.f32 %v801, %v1382
          %v1387 = vadd.f32 %v802, %v1384
          %1388 = vst [vmem:[#allocation5] sm:$0xff] %v1386
          %1389 = vst [vmem:[#allocation5 + $0x8] sm:$0xff] %v1387
          %1390 = vadd.xlane.f32.xlu0 %v1386
          %v1391 = vpop.xlane.xlu0 %1390
          %1392 = vadd.xlane.f32.xlu0 %v1387
          %v1393 = vpop.xlane.xlu0 %1392
          %v1394 = vmul.f32 %v1391, %v817
          %v1395 = vmul.f32 %v1393, %v817
          %v1396 = vsub.f32 %v1386, %v1394
          %v1397 = vsub.f32 %v1387, %v1395
          %v1398 = vmul.f32 %v1396, %v1396
          %v1399 = vmul.f32 %v1397, %v1397
          %1400 = vadd.xlane.f32.xlu0 %v1398
          %v1401 = vpop.xlane.xlu0 %1400
          %1402 = vadd.xlane.f32.xlu0 %v1399
          %v1403 = vpop.xlane.xlu0 %1402
          %v1404 = vmul.f32 %v1401, %v817
          %v1405 = vmul.f32 %v1403, %v817
          %v1406 = vadd.f32 %v1404, 1e-05
          %v1407 = vadd.f32 %v1405, 1e-05
          %v1408 = vrsqrt.pop %v1406
          %v1409 = vmul.f32 %v1408, %v1406
          %v1410 = vmul.f32 %v1409, %v1408
          %v1411 = vmul.f32 0.5, %v1410
          %v1412 = vsub.f32 1.5, %v1411
          %v1413 = vmul.f32 %v1408, %v1412
          %vm1414 = vweird.f32 %v1406
          %vm1415 = vweird.f32 %v1408
          %vm1416 = vmor %vm1414, %vm1415
          %v1417 = vsel %vm1416, %v1408, %v1413
          %v1418 = vrsqrt.pop %v1407
          %v1419 = vmul.f32 %v1418, %v1407
          %v1420 = vmul.f32 %v1419, %v1418
          %v1421 = vmul.f32 0.5, %v1420
          %v1422 = vsub.f32 1.5, %v1421
          %v1423 = vmul.f32 %v1418, %v1422
          %vm1424 = vweird.f32 %v1407
          %vm1425 = vweird.f32 %v1418
          %vm1426 = vmor %vm1424, %vm1425
          %v1427 = vsel %vm1426, %v1418, %v1423
          %v1428 = vmul.f32 %v1396, %v1417
          %v1429 = vmul.f32 %v1397, %v1427
          %1430 = vst [vmem:[#allocation6] sm:$0xff] %v1428
          %1431 = vst [vmem:[#allocation6 + $0x8] sm:$0xff] %v1429
          %1432 = vst [vmem:[#allocation7] sm:$0xff] 0.0
          %1433 = vst [vmem:[#allocation7 + $0x8] sm:$0xff] 0.0
        $region132: #{tpu_custom_call.1} parent=79 // pred_fallthru
          _
        %v1434 = vld [vmem:[#allocation6] sm:$0xff]
        %v1435 = vld [vmem:[#allocation6 + $0x8] sm:$0xff]
        %v1436 = vld [vmem:[%s709] sm:$0xff]
        %v1437 = vld [vmem:[%s709 + $0x8] sm:$0xff]
        %v1438 = vld [vmem:[%s709 + $0x10] sm:$0xff]
        %v1439 = vld [vmem:[%s709 + $0x18] sm:$0xff]
        %v1440 = vld [vmem:[%s709 + $0x20] sm:$0xff]
        %v1441 = vld [vmem:[%s709 + $0x28] sm:$0xff]
        %v1442 = vld [vmem:[%s709 + $0x30] sm:$0xff]
        %v1443 = vld [vmem:[%s709 + $0x38] sm:$0xff]
        %v1444 = vld [vmem:[%s709 + $0x40] sm:$0xff]
        %v1445 = vld [vmem:[%s709 + $0x48] sm:$0xff]
        %v1446 = vld [vmem:[%s709 + $0x50] sm:$0xff]
        %v1447 = vld [vmem:[%s709 + $0x58] sm:$0xff]
        %v1448 = vld [vmem:[%s709 + $0x60] sm:$0xff]
        %v1449 = vld [vmem:[%s709 + $0x68] sm:$0xff]
        %v1450 = vld [vmem:[%s709 + $0x70] sm:$0xff]
        %v1451 = vld [vmem:[%s709 + $0x78] sm:$0xff]
        %v1452 = vpack.c.bf16 %v1435, %v1434
        %v1453 = vld [vmem:[%s792] sm:$0x3]
        %v1455 = vperm.slane %v1453, 0
        %v1456 = vperm.slane %v1453, 1
        %v1475 = vunpack.c.l.b16 %v1436
        %v1476 = vunpack.c.h.b16 %v1436
        %v1477 = vunpack.c.l.b16 %v1437
        %v1478 = vunpack.c.h.b16 %v1437
        %v1479 = vunpack.c.l.b16 %v1438
        %v1480 = vunpack.c.h.b16 %v1438
        %v1481 = vunpack.c.l.b16 %v1439
        %v1482 = vunpack.c.h.b16 %v1439
        %v1483 = vunpack.c.l.b16 %v1440
        %v1484 = vunpack.c.h.b16 %v1440
        %v1485 = vunpack.c.l.b16 %v1441
        %v1486 = vunpack.c.h.b16 %v1441
        %v1487 = vunpack.c.l.b16 %v1442
        %v1488 = vunpack.c.h.b16 %v1442
        %v1489 = vunpack.c.l.b16 %v1443
        %v1490 = vunpack.c.h.b16 %v1443
        %v1491 = vunpack.c.l.b16 %v1444
        %v1492 = vunpack.c.h.b16 %v1444
        %v1493 = vunpack.c.l.b16 %v1445
        %v1494 = vunpack.c.h.b16 %v1445
        %v1495 = vunpack.c.l.b16 %v1446
        %v1496 = vunpack.c.h.b16 %v1446
        %v1497 = vunpack.c.l.b16 %v1447
        %v1498 = vunpack.c.h.b16 %v1447
        %v1499 = vunpack.c.l.b16 %v1448
        %v1500 = vunpack.c.h.b16 %v1448
        %v1501 = vunpack.c.l.b16 %v1449
        %v1502 = vunpack.c.h.b16 %v1449
        %v1503 = vunpack.c.l.b16 %v1450
        %v1504 = vunpack.c.h.b16 %v1450
        %v1505 = vunpack.c.l.b16 %v1451
        %v1506 = vunpack.c.h.b16 %v1451
        %v1507 = vpack.c.b16 %v1477, %v1475
        %v1508 = vpack.c.b16 %v1478, %v1476
        %v1509 = vpack.c.b16 %v1481, %v1479
        %v1510 = vpack.c.b16 %v1482, %v1480
        %v1511 = vpack.c.b16 %v1485, %v1483
        %v1512 = vpack.c.b16 %v1486, %v1484
        %v1513 = vpack.c.b16 %v1489, %v1487
        %v1514 = vpack.c.b16 %v1490, %v1488
        %v1515 = vpack.c.b16 %v1493, %v1491
        %v1516 = vpack.c.b16 %v1494, %v1492
        %v1517 = vpack.c.b16 %v1497, %v1495
        %v1518 = vpack.c.b16 %v1498, %v1496
        %v1519 = vpack.c.b16 %v1501, %v1499
        %v1520 = vpack.c.b16 %v1502, %v1500
        %v1521 = vpack.c.b16 %v1505, %v1503
        %v1522 = vpack.c.b16 %v1506, %v1504
        %1539 = vmatpush.bf16.msra.mxu0 %v1521
        %1540 = vmatpush.bf16.msra.mxu0 %v1519
        %1541 = vmatpush.bf16.msra.mxu0 %v1517
        %1542 = vmatpush.bf16.msra.mxu0 %v1515
        %1543 = vmatpush.bf16.msra.mxu0 %v1513
        %1544 = vmatpush.bf16.msra.mxu0 %v1511
        %1545 = vmatpush.bf16.msra.mxu0 %v1509
        %1546 = vmatpush.bf16.msra.mxu0 %v1507
        %1547 = vmatmul.bf16.gmra.mxu0 %v1452
        %v1548 = vpop.f32.mrf.mxu0
        %v1549 = vadd.f32 %v1455, %v1548
        %v1550 = vpop.f32.mrf.mxu0
        %v1551 = vadd.f32 %v1455, %v1550
        %1552 = vdwg.mxu0
        %1553 = vmatpush.bf16.msra.mxu0 %v1522
        %1554 = vmatpush.bf16.msra.mxu0 %v1520
        %1555 = vmatpush.bf16.msra.mxu0 %v1518
        %1556 = vmatpush.bf16.msra.mxu0 %v1516
        %1557 = vmatpush.bf16.msra.mxu0 %v1514
        %1558 = vmatpush.bf16.msra.mxu0 %v1512
        %1559 = vmatpush.bf16.msra.mxu0 %v1510
        %1560 = vmatpush.bf16.msra.mxu0 %v1508
        %1561 = vmatmul.bf16.gmra.mxu0 %v1452
        %v1562 = vpop.f32.mrf.mxu0
        %v1563 = vadd.f32 %v1456, %v1562
        %v1564 = vpop.f32.mrf.mxu0
        %v1565 = vadd.f32 %v1456, %v1564
        %1566 = vdwg.mxu0
        %v1567 = vld [vmem:[#allocation7] sm:$0xff]
        %v1568 = vld [vmem:[#allocation7 + $0x8] sm:$0xff]
        %v1569 = vmul.f32 %v1549, 0.5
        %v1570 = vmul.f32 %v1563, 0.5
        %v1571 = vmul.f32 %v1551, 0.5
        %v1572 = vmul.f32 %v1565, 0.5
        %v1573 = vmul.f32 %v1549, 0.70710677
        %v1574 = vmul.f32 %v1563, 0.70710677
        %v1575 = vmul.f32 %v1551, 0.70710677
        %v1576 = vmul.f32 %v1565, 0.70710677
        %v1577 = vmul.f32 %v1573, %v1573
        %v1578 = vmin.f32 16.0, %v1577
        %v1579 = vmul.f32 %v1578, 2.1237322e-06
        %v1580 = vadd.f32 %v1579, 0.00028619796
        %v1581 = vmul.f32 %v1578, %v1580
        %v1582 = vadd.f32 %v1581, 0.0036580483
        %v1583 = vmul.f32 %v1578, %v1582
        %v1584 = vadd.f32 %v1583, 0.05243302
        %v1585 = vmul.f32 %v1578, %v1584
        %v1586 = vadd.f32 %v1585, 0.18741608
        %v1587 = vmul.f32 %v1578, %v1586
        %v1588 = vadd.f32 %v1587, 1.1283791
        %v1589 = vmul.f32 %v1573, %v1588
        %v1590 = vmul.f32 %v1578, 3.8918573e-05
        %v1591 = vadd.f32 %v1590, 0.001143296
        %v1592 = vmul.f32 %v1578, %v1591
        %v1593 = vadd.f32 %v1592, 0.014752088
        %v1594 = vmul.f32 %v1578, %v1593
        %v1595 = vadd.f32 %v1594, 0.112945676
        %v1596 = vmul.f32 %v1578, %v1595
        %v1597 = vadd.f32 %v1596, 0.4994258
        %v1598 = vmul.f32 %v1578, %v1597
        %v1599 = vadd.f32 %v1598, 1.0
        %v1600 = vrcp.pop %v1599
        %v1601 = vmul.f32 %v1599, %v1600
        %v1602 = vsub.f32 1.0, %v1601
        %v1603 = vmul.f32 %v1600, %v1602
        %v1604 = vadd.f32 %v1600, %v1603
        %vm1605 = vweird.f32 %v1599
        %vm1606 = vweird.f32 %v1600
        %vm1607 = vmor %vm1605, %vm1606
        %v1608 = vsel %vm1607, %v1600, %v1604
        %v1609 = vand.u32 2147483647, %v1599
        %vm1610 = vcmp.eq.f32.partialorder %v1609, 8.507059e+37
        %v1611 = vand.u32 %v1599, 2147483648
        %v1612 = vor.u32 1.1754944e-38, %v1611
        %v1613 = vsel %vm1610, %v1612, %v1608
        %v1614 = vmul.f32 %v1589, %v1613
        %v1615 = vmin.f32 %v1614, 1.0
        %v1616 = vmax.f32 %v1615, -1.0
        %v1617 = vmul.f32 %v1574, %v1574
        %v1618 = vmin.f32 16.0, %v1617
        %v1619 = vmul.f32 %v1618, 2.1237322e-06
        %v1620 = vadd.f32 %v1619, 0.00028619796
        %v1621 = vmul.f32 %v1618, %v1620
        %v1622 = vadd.f32 %v1621, 0.0036580483
        %v1623 = vmul.f32 %v1618, %v1622
        %v1624 = vadd.f32 %v1623, 0.05243302
        %v1625 = vmul.f32 %v1618, %v1624
        %v1626 = vadd.f32 %v1625, 0.18741608
        %v1627 = vmul.f32 %v1618, %v1626
        %v1628 = vadd.f32 %v1627, 1.1283791
        %v1629 = vmul.f32 %v1574, %v1628
        %v1630 = vmul.f32 %v1618, 3.8918573e-05
        %v1631 = vadd.f32 %v1630, 0.001143296
        %v1632 = vmul.f32 %v1618, %v1631
        %v1633 = vadd.f32 %v1632, 0.014752088
        %v1634 = vmul.f32 %v1618, %v1633
        %v1635 = vadd.f32 %v1634, 0.112945676
        %v1636 = vmul.f32 %v1618, %v1635
        %v1637 = vadd.f32 %v1636, 0.4994258
        %v1638 = vmul.f32 %v1618, %v1637
        %v1639 = vadd.f32 %v1638, 1.0
        %v1640 = vrcp.pop %v1639
        %v1641 = vmul.f32 %v1639, %v1640
        %v1642 = vsub.f32 1.0, %v1641
        %v1643 = vmul.f32 %v1640, %v1642
        %v1644 = vadd.f32 %v1640, %v1643
        %vm1645 = vweird.f32 %v1639
        %vm1646 = vweird.f32 %v1640
        %vm1647 = vmor %vm1645, %vm1646
        %v1648 = vsel %vm1647, %v1640, %v1644
        %v1649 = vand.u32 2147483647, %v1639
        %vm1650 = vcmp.eq.f32.partialorder %v1649, 8.507059e+37
        %v1651 = vand.u32 %v1639, 2147483648
        %v1652 = vor.u32 1.1754944e-38, %v1651
        %v1653 = vsel %vm1650, %v1652, %v1648
        %v1654 = vmul.f32 %v1629, %v1653
        %v1655 = vmin.f32 %v1654, 1.0
        %v1656 = vmax.f32 %v1655, -1.0
        %v1657 = vmul.f32 %v1575, %v1575
        %v1658 = vmin.f32 16.0, %v1657
        %v1659 = vmul.f32 %v1658, 2.1237322e-06
        %v1660 = vadd.f32 %v1659, 0.00028619796
        %v1661 = vmul.f32 %v1658, %v1660
        %v1662 = vadd.f32 %v1661, 0.0036580483
        %v1663 = vmul.f32 %v1658, %v1662
        %v1664 = vadd.f32 %v1663, 0.05243302
        %v1665 = vmul.f32 %v1658, %v1664
        %v1666 = vadd.f32 %v1665, 0.18741608
        %v1667 = vmul.f32 %v1658, %v1666
        %v1668 = vadd.f32 %v1667, 1.1283791
        %v1669 = vmul.f32 %v1575, %v1668
        %v1670 = vmul.f32 %v1658, 3.8918573e-05
        %v1671 = vadd.f32 %v1670, 0.001143296
        %v1672 = vmul.f32 %v1658, %v1671
        %v1673 = vadd.f32 %v1672, 0.014752088
        %v1674 = vmul.f32 %v1658, %v1673
        %v1675 = vadd.f32 %v1674, 0.112945676
        %v1676 = vmul.f32 %v1658, %v1675
        %v1677 = vadd.f32 %v1676, 0.4994258
        %v1678 = vmul.f32 %v1658, %v1677
        %v1679 = vadd.f32 %v1678, 1.0
        %v1680 = vrcp.pop %v1679
        %v1681 = vmul.f32 %v1679, %v1680
        %v1682 = vsub.f32 1.0, %v1681
        %v1683 = vmul.f32 %v1680, %v1682
        %v1684 = vadd.f32 %v1680, %v1683
        %vm1685 = vweird.f32 %v1679
        %vm1686 = vweird.f32 %v1680
        %vm1687 = vmor %vm1685, %vm1686
        %v1688 = vsel %vm1687, %v1680, %v1684
        %v1689 = vand.u32 2147483647, %v1679
        %vm1690 = vcmp.eq.f32.partialorder %v1689, 8.507059e+37
        %v1691 = vand.u32 %v1679, 2147483648
        %v1692 = vor.u32 1.1754944e-38, %v1691
        %v1693 = vsel %vm1690, %v1692, %v1688
        %v1694 = vmul.f32 %v1669, %v1693
        %v1695 = vmin.f32 %v1694, 1.0
        %v1696 = vmax.f32 %v1695, -1.0
        %v1697 = vmul.f32 %v1576, %v1576
        %v1698 = vmin.f32 16.0, %v1697
        %v1699 = vmul.f32 %v1698, 2.1237322e-06
        %v1700 = vadd.f32 %v1699, 0.00028619796
        %v1701 = vmul.f32 %v1698, %v1700
        %v1702 = vadd.f32 %v1701, 0.0036580483
        %v1703 = vmul.f32 %v1698, %v1702
        %v1704 = vadd.f32 %v1703, 0.05243302
        %v1705 = vmul.f32 %v1698, %v1704
        %v1706 = vadd.f32 %v1705, 0.18741608
        %v1707 = vmul.f32 %v1698, %v1706
        %v1708 = vadd.f32 %v1707, 1.1283791
        %v1709 = vmul.f32 %v1576, %v1708
        %v1710 = vmul.f32 %v1698, 3.8918573e-05
        %v1711 = vadd.f32 %v1710, 0.001143296
        %v1712 = vmul.f32 %v1698, %v1711
        %v1713 = vadd.f32 %v1712, 0.014752088
        %v1714 = vmul.f32 %v1698, %v1713
        %v1715 = vadd.f32 %v1714, 0.112945676
        %v1716 = vmul.f32 %v1698, %v1715
        %v1717 = vadd.f32 %v1716, 0.4994258
        %v1718 = vmul.f32 %v1698, %v1717
        %v1719 = vadd.f32 %v1718, 1.0
        %v1720 = vrcp.pop %v1719
        %v1721 = vmul.f32 %v1719, %v1720
        %v1722 = vsub.f32 1.0, %v1721
        %v1723 = vmul.f32 %v1720, %v1722
        %v1724 = vadd.f32 %v1720, %v1723
        %vm1725 = vweird.f32 %v1719
        %vm1726 = vweird.f32 %v1720
        %vm1727 = vmor %vm1725, %vm1726
        %v1728 = vsel %vm1727, %v1720, %v1724
        %v1729 = vand.u32 2147483647, %v1719
        %vm1730 = vcmp.eq.f32.partialorder %v1729, 8.507059e+37
        %v1731 = vand.u32 %v1719, 2147483648
        %v1732 = vor.u32 1.1754944e-38, %v1731
        %v1733 = vsel %vm1730, %v1732, %v1728
        %v1734 = vmul.f32 %v1709, %v1733
        %v1735 = vmin.f32 %v1734, 1.0
        %v1736 = vmax.f32 %v1735, -1.0
        %v1737 = vadd.f32 %v1616, 1.0
        %v1738 = vadd.f32 %v1656, 1.0
        %v1739 = vadd.f32 %v1696, 1.0
        %v1740 = vadd.f32 %v1736, 1.0
        %v1741 = vmul.f32 %v1569, %v1737
        %v1742 = vmul.f32 %v1570, %v1738
        %v1743 = vmul.f32 %v1571, %v1739
        %v1744 = vmul.f32 %v1572, %v1740
        %v1745 = vld [vmem:[%s719] sm:$0xf]
        %v1746 = vld [vmem:[%s719 + $0x4] sm:$0xf]
        %v1747 = vld [vmem:[%s719 + $0x8] sm:$0xf]
        %v1748 = vld [vmem:[%s719 + $0xc] sm:$0xf]
        %v1749 = vld [vmem:[%s719 + $0x10] sm:$0xf]
        %v1750 = vld [vmem:[%s719 + $0x14] sm:$0xf]
        %v1751 = vld [vmem:[%s719 + $0x18] sm:$0xf]
        %v1752 = vld [vmem:[%s719 + $0x1c] sm:$0xf]
        %v1753 = vld [vmem:[%s719 + $0x20] sm:$0xf]
        %v1754 = vld [vmem:[%s719 + $0x24] sm:$0xf]
        %v1755 = vld [vmem:[%s719 + $0x28] sm:$0xf]
        %v1756 = vld [vmem:[%s719 + $0x2c] sm:$0xf]
        %v1757 = vld [vmem:[%s719 + $0x30] sm:$0xf]
        %v1758 = vld [vmem:[%s719 + $0x34] sm:$0xf]
        %v1759 = vld [vmem:[%s719 + $0x38] sm:$0xf]
        %v1760 = vld [vmem:[%s719 + $0x3c] sm:$0xf]
        %v1761 = vld [vmem:[%s719 + $0x40] sm:$0xf]
        %v1762 = vld [vmem:[%s719 + $0x44] sm:$0xf]
        %v1763 = vld [vmem:[%s719 + $0x48] sm:$0xf]
        %v1764 = vld [vmem:[%s719 + $0x4c] sm:$0xf]
        %v1765 = vld [vmem:[%s719 + $0x50] sm:$0xf]
        %v1766 = vld [vmem:[%s719 + $0x54] sm:$0xf]
        %v1767 = vld [vmem:[%s719 + $0x58] sm:$0xf]
        %v1768 = vld [vmem:[%s719 + $0x5c] sm:$0xf]
        %v1769 = vld [vmem:[%s719 + $0x60] sm:$0xf]
        %v1770 = vld [vmem:[%s719 + $0x64] sm:$0xf]
        %v1771 = vld [vmem:[%s719 + $0x68] sm:$0xf]
        %v1772 = vld [vmem:[%s719 + $0x6c] sm:$0xf]
        %v1773 = vld [vmem:[%s719 + $0x70] sm:$0xf]
        %v1774 = vld [vmem:[%s719 + $0x74] sm:$0xf]
        %v1775 = vld [vmem:[%s719 + $0x78] sm:$0xf]
        %v1776 = vld [vmem:[%s719 + $0x7c] sm:$0xf]
        %v1777 = vpack.c.bf16 %v1743, %v1741
        %v1778 = vpack.c.bf16 %v1744, %v1742
        %v1811 = vunpack.c.l.b16 %v1745
        %v1812 = vunpack.c.l.b16 %v1746
        %v1813 = vunpack.c.l.b16 %v1747
        %v1814 = vunpack.c.l.b16 %v1748
        %v1815 = vunpack.c.l.b16 %v1749
        %v1816 = vunpack.c.l.b16 %v1750
        %v1817 = vunpack.c.l.b16 %v1751
        %v1818 = vunpack.c.l.b16 %v1752
        %v1819 = vunpack.c.l.b16 %v1753
        %v1820 = vunpack.c.l.b16 %v1754
        %v1821 = vunpack.c.l.b16 %v1755
        %v1822 = vunpack.c.l.b16 %v1756
        %v1823 = vunpack.c.l.b16 %v1757
        %v1824 = vunpack.c.l.b16 %v1758
        %v1825 = vunpack.c.l.b16 %v1759
        %v1826 = vunpack.c.l.b16 %v1760
        %v1827 = vunpack.c.l.b16 %v1761
        %v1828 = vunpack.c.l.b16 %v1762
        %v1829 = vunpack.c.l.b16 %v1763
        %v1830 = vunpack.c.l.b16 %v1764
        %v1831 = vunpack.c.l.b16 %v1765
        %v1832 = vunpack.c.l.b16 %v1766
        %v1833 = vunpack.c.l.b16 %v1767
        %v1834 = vunpack.c.l.b16 %v1768
        %v1835 = vunpack.c.l.b16 %v1769
        %v1836 = vunpack.c.l.b16 %v1770
        %v1837 = vunpack.c.l.b16 %v1771
        %v1838 = vunpack.c.l.b16 %v1772
        %v1839 = vunpack.c.l.b16 %v1773
        %v1840 = vunpack.c.l.b16 %v1774
        %v1841 = vunpack.c.l.b16 %v1775
        %v1842 = vunpack.c.l.b16 %v1776
        %v1843 = vpack.c.b16 %v1812, %v1811
        %v1844 = vpack.c.b16 %v1814, %v1813
        %v1845 = vpack.c.b16 %v1816, %v1815
        %v1846 = vpack.c.b16 %v1818, %v1817
        %v1847 = vpack.c.b16 %v1820, %v1819
        %v1848 = vpack.c.b16 %v1822, %v1821
        %v1849 = vpack.c.b16 %v1824, %v1823
        %v1850 = vpack.c.b16 %v1826, %v1825
        %v1851 = vpack.c.b16 %v1828, %v1827
        %v1852 = vpack.c.b16 %v1830, %v1829
        %v1853 = vpack.c.b16 %v1832, %v1831
        %v1854 = vpack.c.b16 %v1834, %v1833
        %v1855 = vpack.c.b16 %v1836, %v1835
        %v1856 = vpack.c.b16 %v1838, %v1837
        %v1857 = vpack.c.b16 %v1840, %v1839
        %v1858 = vpack.c.b16 %v1842, %v1841
        %1875 = vmatpush.bf16.msra.mxu0 %v1850
        %1876 = vmatpush.bf16.msra.mxu0 %v1849
        %1877 = vmatpush.bf16.msra.mxu0 %v1848
        %1878 = vmatpush.bf16.msra.mxu0 %v1847
        %1879 = vmatpush.bf16.msra.mxu0 %v1846
        %1880 = vmatpush.bf16.msra.mxu0 %v1845
        %1881 = vmatpush.bf16.msra.mxu0 %v1844
        %1882 = vmatpush.bf16.msra.mxu0 %v1843
        %1883 = vmatmul.bf16.gmra.mxu0 %v1777
        %v1884 = vpop.f32.mrf.mxu0
        %v1885 = vadd.f32 0.0, %v1884
        %v1886 = vpop.f32.mrf.mxu0
        %v1887 = vadd.f32 0.0, %v1886
        %1888 = vdwg.mxu0
        %1889 = vmatpush.bf16.msra.mxu0 %v1858
        %1890 = vmatpush.bf16.msra.mxu0 %v1857
        %1891 = vmatpush.bf16.msra.mxu0 %v1856
        %1892 = vmatpush.bf16.msra.mxu0 %v1855
        %1893 = vmatpush.bf16.msra.mxu0 %v1854
        %1894 = vmatpush.bf16.msra.mxu0 %v1853
        %1895 = vmatpush.bf16.msra.mxu0 %v1852
        %1896 = vmatpush.bf16.msra.mxu0 %v1851
        %1897 = vmatmul.bf16.gmra.mxu0 %v1778
        %v1898 = vpop.f32.mrf.mxu0
        %v1899 = vadd.f32 %v1885, %v1898
        %v1900 = vpop.f32.mrf.mxu0
        %v1901 = vadd.f32 %v1887, %v1900
        %1902 = vdwg.mxu0
        %v1903 = vadd.f32 %v1567, %v1899
        %v1904 = vadd.f32 %v1568, %v1901
        %1905 = vst [vmem:[#allocation7] sm:$0xff] %v1903
        %1906 = vst [vmem:[#allocation7 + $0x8] sm:$0xff] %v1904
        %p1907 = scmp.eq.s32.totalorder %s44, 1
        // Predicated region
        $region140: #{tpu_custom_call.1} parent=79 // pred_check
          %p1908 = pneg %p1907
        $region141: #{tpu_custom_call.1} parent=79 // pred_check_branch
          %1910 = sbr.rel (%p1908) target = $region143
        $region142: #{tpu_custom_call.1} parent=79 // pred_region
          %v1911 = vld [vmem:[#allocation5] sm:$0xff]
          %v1912 = vld [vmem:[#allocation5 + $0x8] sm:$0xff]
          %v1913 = vld [vmem:[#allocation7] sm:$0xff]
          %v1914 = vld [vmem:[#allocation7 + $0x8] sm:$0xff]
          %v1915 = vadd.f32 %v1911, %v1913
          %v1916 = vadd.f32 %v1912, %v1914
          %v1917 = vld [vmem:[%s13] sm:$0x1]
          %v1919 = vperm.slane %v1917, 0
          %v1921 = vadd.f32 %v1915, %v1919
          %v1922 = vadd.f32 %v1916, %v1919
          %1923 = vst [vmem:[%s785] sm:$0xff] %v1921
          %1924 = vst [vmem:[%s785 + $0x8] sm:$0xff] %v1922
        $region143: #{tpu_custom_call.1} parent=79 // pred_fallthru
          _
        %s1925 = sand.u32 %s399, 1
        %s1926 = scalar_lea.sflag [#allocation10], %s1925
        %s1927 = sand.u32 %s399, 1
        %s1928 = smul.addr %s1927, 16
        %s1929 = scalar_lea.vmem [#allocation27], %s1928
        // Predicated region
        $region144: #{tpu_custom_call.1} parent=79 // pred_check
          %p1930 = pneg %p409
        $region145: #{tpu_custom_call.1} parent=79 // pred_check_branch
          %1932 = sbr.rel (%p1930) target = $region147
        $region146: #{tpu_custom_call.1} parent=79 // pred_region
          %s1933 = smul.u32 2, %s43
          %1935 = vsyncadd %s1926, 0
          %s1936 = smul.addr %s1933, 8
          %s1937 = scalar_lea.hbm %s15, %s1936
          %s1938 = sshll.u32 %s1929, 4
          %s1939 = int_to_ptr.vmem [resolvable:$true] %s1938
          %s1940 = sshll.u32 %s1937, 4
          %s1941 = int_to_ptr.hbm [resolvable:$true] %s1940
          %1946 = dma.vmem_to_hbm [thread:$0]  %s1939, 256, %s1941, %s1926, 128, 128, 8
        $region147: #{tpu_custom_call.1} parent=79 // pred_fallthru
          _
      $region80: #{tpu_custom_call.1} parent=5 // pred_fallthru
        _
      %p1947 = scmp.le.s32.totalorder 2, %s34
      // Predicated region
      $region148: #{tpu_custom_call.1} parent=5 // pred_check
        %p1948 = pneg %p1947
      $region149: #{tpu_custom_call.1} parent=5 // pred_check_branch
        %1950 = sbr.rel (%p1948) target = $region151
      $region150: #{tpu_custom_call.1} parent=5 // pred_region
        %s1951 = ssub.s32 %s34, 2
        // Predicated region
        $region152: #{tpu_custom_call.1} parent=150 // pred_check
          %p1952 = pneg %p415
        $region153: #{tpu_custom_call.1} parent=150 // pred_check_branch
          %1954 = sbr.rel (%p1952) target = $region155
        $region154: #{tpu_custom_call.1} parent=150 // pred_region
          %s1955 = sand.u32 %s400, 1
          %s1956 = scalar_lea.sflag [#allocation10], %s1955
          %s1957 = sand.u32 %s400, 1
          %s1958 = smul.addr %s1957, 16
          %s1959 = scalar_lea.vmem [#allocation27], %s1958
          %1961 = dma.done %s1956, 256
        $region155: #{tpu_custom_call.1} parent=150 // pred_fallthru
          _
      $region151: #{tpu_custom_call.1} parent=5 // pred_fallthru
        _
    $region6: #{tpu_custom_call.1} parent=1 // loop_footer
      %s38 = sadd.s32 1, %s34
    $region7: #{tpu_custom_call.1} parent=1 // loop_footer_branch
      %33 = sbr.rel target = $region3
    $region8: #{tpu_custom_call.1} parent=1 // loop_exit
      _
    %1962 = vsyncpa [#allocation9], 1
    %s1963 = scalar_lea.sflag [#allocation9], 1
    %1964 = vsyncpa %s1963, 1
    %1965 = vsyncpa [#allocation12], 1
    %s1966 = scalar_lea.sflag [#allocation12], 1
    %1967 = vsyncpa %s1966, 1
    %1968 = vsyncpa [#allocation15], 1
    %1969 = vsyncpa [#allocation18], 1
    %1970 = vsyncpa [#allocation21], 1
    %1971 = vsyncpa [#allocation24], 1
    %1972 = vsyncpa [#allocation10], 1
    %s1973 = scalar_lea.sflag [#allocation10], 1
    %1974 = vsyncpa %s1973, 1

</llo_original>
